<compile_context>
chip_gen: v7x
topology: tpu7x:2x2x1
jax: 0.10.0
libtpu: 0.0.40
codegen_flags: <defaults>
</compile_context>

<pallas_src>
import math
import functools

import jax
import jax.numpy as jnp
from jax.experimental import pallas as pl
from jax.experimental.pallas import tpu as pltpu


# ----------------------------------------------------------------------------
# Kernel
# ----------------------------------------------------------------------------
def tabnet_kernel(x_ref, pe_ref, wstack_ref, vstack_ref, convw_ref, bstack_ref,
                  l1w_ref, l2w_ref, out_ref):
    BB, T, C = x_ref.shape
    KC, OUTC = convw_ref.shape            # (KSIZE*C, 64)
    KSIZE = KC // C
    T_out = T - (KSIZE - 1)
    H1 = l1w_ref.shape[1]
    H2 = l2w_ref.shape[1]
    N = BB * T

    # packed LayerNorm / bias vectors: (12, C)
    vec = vstack_ref[...]
    ln0w, ln0b = vec[0:1], vec[1:2]
    bq, bk, bv, bo = vec[2:3], vec[3:4], vec[4:5], vec[5:6]
    ln1w, ln1b = vec[6:7], vec[7:8]
    b1, b2 = vec[8:9], vec[9:10]
    lnfw, lnfb = vec[10:11], vec[11:12]

    # packed square weights (stored transposed: y = x @ W^T_pytorch): (6, C, C)
    wq = wstack_ref[0]
    wk = wstack_ref[1]
    wv = wstack_ref[2]
    wo = wstack_ref[3]
    w1 = wstack_ref[4]
    w2 = wstack_ref[5]

    def layernorm(h, w, b, eps=1e-5):
        mu = jnp.mean(h, axis=-1, keepdims=True)
        var = jnp.mean(jnp.square(h - mu), axis=-1, keepdims=True)
        return (h - mu) * jax.lax.rsqrt(var + eps) * w + b

    # ---- embed scale + (per-batch-row) positional encoding -----------------
    x3 = x_ref[...] * jnp.float32(math.sqrt(C)) + pe_ref[...]       # (BB, T, C)
    x2 = x3.reshape(N, C)                                           # flat slab

    # ---- Transformer encoder layer (pre-norm, 1 head, no attn mask) --------
    h2 = layernorm(x2, ln0w, ln0b)
    q2 = (jnp.dot(h2, wq, preferred_element_type=jnp.float32) + bq) \
        * jnp.float32(C ** -0.5)                                    # head_dim^-0.5
    k2 = jnp.dot(h2, wk, preferred_element_type=jnp.float32) + bk
    v2 = jnp.dot(h2, wv, preferred_element_type=jnp.float32) + bv

    q3 = q2.reshape(BB, T, C)
    k3 = k2.reshape(BB, T, C)
    v3 = v2.reshape(BB, T, C)
    scores = jnp.einsum('bqc,bkc->bqk', q3, k3,
                        preferred_element_type=jnp.float32)
    scores = scores * jnp.float32(1.0 / math.sqrt(T))   # reference /= sqrt(src_len)
    scores = scores - jnp.max(scores, axis=-1, keepdims=True)
    p = jnp.exp(scores)
    attn = p * pl.reciprocal(jnp.sum(p, axis=-1, keepdims=True), approx=True)
    a3 = jnp.einsum('bqk,bkc->bqc', attn, v3, preferred_element_type=jnp.float32)
    a2 = jnp.dot(a3.reshape(N, C), wo, preferred_element_type=jnp.float32) + bo
    x2 = x2 + a2                                        # residual (res_dropout=0)

    h2 = layernorm(x2, ln1w, ln1b)
    h2 = jnp.maximum(
        jnp.dot(h2, w1, preferred_element_type=jnp.float32) + b1, 0.0)
    h2 = jnp.dot(h2, w2, preferred_element_type=jnp.float32) + b2
    x2 = x2 + h2                                        # residual
    x2 = layernorm(x2, lnfw, lnfb)                      # final encoder LayerNorm

    # ---- Conv1d(C->64, k=7, valid) + ReLU + avg pool as one im2col matmul --
    x3 = x2.reshape(BB, T, C)
    cols = [x3] + [jnp.roll(x3, -kk, axis=1) for kk in range(1, KSIZE)]
    x_unf = jnp.concatenate(cols, axis=-1).reshape(N, KC)           # (N, K*C)
    bvecs = bstack_ref[...]                                         # (3, 64)
    conv = jnp.dot(x_unf, convw_ref[...],
                   preferred_element_type=jnp.float32) + bvecs[0:1]
    conv = jnp.maximum(conv, 0.0).reshape(BB, T, OUTC)
    # positions t >= T_out only see wrapped (invalid) windows -> mask them out
    t_idx = jax.lax.broadcasted_iota(jnp.int32, (1, T, 1), 1)
    valid = (t_idx < T_out).astype(jnp.float32)
    feat = jnp.sum(conv * valid, axis=1) * jnp.float32(1.0 / T_out)  # (BB, 64)

    # ---- head: Linear(64->16)+sigmoid, [dropout p=0.8 eval=id], Linear(16->4)+relu
    z = jnp.dot(feat, l1w_ref[...],
                preferred_element_type=jnp.float32) + bvecs[1:2, :H1]
    z = jax.nn.sigmoid(z)
    o = jnp.dot(z, l2w_ref[...],
                preferred_element_type=jnp.float32) + bvecs[2:3, :H2]
    out_ref[...] = jnp.maximum(o, 0.0)                              # (BB, 4)


# ----------------------------------------------------------------------------
# Parameter construction (deterministic, synthetic)
# ----------------------------------------------------------------------------
def make_params(key, in_channels, conv_out=64, ksize=7, hid1=16, hid2=4):
    C = in_channels
    ks = jax.random.split(key, 12)

    def w(k, shape, scale=0.1):
        return scale * jax.random.normal(k, shape, jnp.float32)

    return dict(
        # layer_norms[0]
        ln0w=jnp.ones((C,), jnp.float32), ln0b=jnp.zeros((C,), jnp.float32),
        # in_proj q/k/v slices (stored transposed: x @ W^T)
        wq=w(ks[0], (C, C)), bq=jnp.zeros((C,), jnp.float32),
        wk=w(ks[1], (C, C)), bk=jnp.zeros((C,), jnp.float32),
        wv=w(ks[2], (C, C)), bv=jnp.zeros((C,), jnp.float32),
        # out_proj
        wo=w(ks[3], (C, C)), bo=jnp.zeros((C,), jnp.float32),
        # layer_norms[1]
        ln1w=jnp.ones((C,), jnp.float32), ln1b=jnp.zeros((C,), jnp.float32),
        # fc1 / fc2 (transposed)
        w1=w(ks[4], (C, C)), b1=w(ks[5], (C,), 0.05),
        w2=w(ks[6], (C, C)), b2=w(ks[7], (C,), 0.05),
        # encoder final LayerNorm
        lnfw=jnp.ones((C,), jnp.float32), lnfb=jnp.zeros((C,), jnp.float32),
        # Conv1d(C, 64, 7): (k, C, 64) so reshape -> (k*C, 64) im2col weight
        convw=w(ks[8], (ksize, C, conv_out)), convb=w(ks[9], (conv_out,), 0.05),
        # Linear(64->16), Linear(16->4) (transposed)
        l1w=w(ks[10], (conv_out, hid1)), l1b=jnp.zeros((hid1,), jnp.float32),
        l2w=w(ks[11], (hid1, hid2)), l2b=jnp.zeros((hid2,), jnp.float32),
    )


def positional_encoding_rows(n_rows, num_hiddens):
    """Rows 0..n_rows-1 of PositionalEncoding.P[0] (shape (n_rows, num_hiddens))."""
    pos = jnp.arange(n_rows, dtype=jnp.float32).reshape(-1, 1)
    div = jnp.power(10000.0,
                    jnp.arange(0, num_hiddens, 2, dtype=jnp.float32) / num_hiddens)
    X = pos / div
    pe = jnp.zeros((n_rows, num_hiddens), jnp.float32)
    pe = pe.at[:, 0::2].set(jnp.sin(X))
    pe = pe.at[:, 1::2].set(jnp.cos(X))
    return pe


# ----------------------------------------------------------------------------
# Wrapper
# ----------------------------------------------------------------------------
_W_ORDER = ("wq", "wk", "wv", "wo", "w1", "w2")
_V_ORDER = ("ln0w", "ln0b", "bq", "bk", "bv", "bo",
            "ln1w", "ln1b", "b1", "b2", "lnfw", "lnfb")


@functools.partial(jax.jit, static_argnames=("block_b",))
def tabnet_forward(eeg, params, block_b=8):
    B, _, C, T = eeg.shape
    # (B, 1, C, T) -> (B, C, T) -> (B, T, C).  Cheap one-shot XLA transpose;
    # all per-element work happens inside the fused kernel.
    x = jnp.transpose(jnp.squeeze(eeg, axis=1), (0, 2, 1)).astype(jnp.float32)

    BB = min(B, block_b)                       # samples per grid step
    Bp = ((B + BB - 1) // BB) * BB             # padded batch
    if Bp != B:
        x = jnp.pad(x, ((0, Bp - B), (0, 0), (0, 0)))

    # per-batch positional-encoding row (reference adds P[:, :B, :] to (T,B,C))
    pe = positional_encoding_rows(Bp, C).reshape(Bp, 1, C)

    # ---- pack 24 tiny parameter tensors into 6 inputs ----------------------
    wstack = jnp.stack([params[k] for k in _W_ORDER])              # (6, C, C)
    vstack = jnp.stack([params[k] for k in _V_ORDER])              # (12, C)
    ksize, _, conv_out = params["convw"].shape
    convw2d = params["convw"].reshape(ksize * C, conv_out)         # (k*C, 64)
    hid1 = params["l1w"].shape[1]
    hid2 = params["l2w"].shape[1]
    bstack = jnp.stack([params["convb"],
                        jnp.pad(params["l1b"], (0, conv_out - hid1)),
                        jnp.pad(params["l2b"], (0, conv_out - hid2))])  # (3, 64)

    out = pl.pallas_call(
        tabnet_kernel,
        grid=(Bp // BB,),
        in_specs=[
            pl.BlockSpec((BB, T, C), lambda b: (b, 0, 0)),      # x
            pl.BlockSpec((BB, 1, C), lambda b: (b, 0, 0)),      # pe
            pl.BlockSpec(wstack.shape, lambda b: (0, 0, 0)),    # square weights
            pl.BlockSpec(vstack.shape, lambda b: (0, 0)),       # LN / bias vectors
            pl.BlockSpec(convw2d.shape, lambda b: (0, 0)),      # im2col conv weight
            pl.BlockSpec(bstack.shape, lambda b: (0, 0)),       # conv/head biases
            pl.BlockSpec(params["l1w"].shape, lambda b: (0, 0)),
            pl.BlockSpec(params["l2w"].shape, lambda b: (0, 0)),
        ],
        out_specs=pl.BlockSpec((BB, hid2), lambda b: (b, 0)),
        out_shape=jax.ShapeDtypeStruct((Bp, hid2), jnp.float32),
        compiler_params=pltpu.CompilerParams(
            dimension_semantics=("parallel",)),
    )(x, pe, wstack, vstack, convw2d, bstack, params["l1w"], params["l2w"])
    return out[:B]


# ----------------------------------------------------------------------------
# Main
# ----------------------------------------------------------------------------
if __name__ == "__main__":
    B, C, T = 2, 8, 32           # batch, in_channels, sequence length
    key = jax.random.PRNGKey(0)
    k_in, k_par = jax.random.split(key)

    eeg = jax.random.normal(k_in, (B, 1, C, T), jnp.float32)
    params = make_params(k_par, in_channels=C)

    out = tabnet_forward(eeg, params)
    out = jax.block_until_ready(out)

    assert out.shape == (B, 4)
    assert bool(jnp.all(jnp.isfinite(out)))
    print("KERNEL_OK")
</pallas_src>

<mosaic_0001>
module attributes {stable_mosaic.version = 11 : i64} {
  func.func @tabnet_kernel(%arg0: i32, %arg1: memref<2x32x8xf32, #tpu.memory_space<vmem>>, %arg2: memref<2x1x8xf32, #tpu.memory_space<vmem>>, %arg3: memref<6x8x8xf32, #tpu.memory_space<vmem>>, %arg4: memref<12x8xf32, #tpu.memory_space<vmem>>, %arg5: memref<56x64xf32, #tpu.memory_space<vmem>>, %arg6: memref<3x64xf32, #tpu.memory_space<vmem>>, %arg7: memref<64x16xf32, #tpu.memory_space<vmem>>, %arg8: memref<16x4xf32, #tpu.memory_space<vmem>>, %arg9: memref<2x4xf32, #tpu.memory_space<vmem>>) attributes {dimension_semantics = [#tpu.dimension_semantics<parallel>], iteration_bounds = array<i64: 1>, scalar_prefetch = 0 : i64, scratch_operands = 0 : i64, tpu.core_type = #tpu.core_type<tc>, window_params = [{transform_indices = @transform_0, window_bounds = array<i64: 2, 32, 8>}, {transform_indices = @transform_1, window_bounds = array<i64: 2, 1, 8>}, {pipeline_mode = #tpu.pipeline_mode<synchronous>, transform_indices = @transform_2, window_bounds = array<i64: 6, 8, 8>}, {pipeline_mode = #tpu.pipeline_mode<synchronous>, transform_indices = @transform_3, window_bounds = array<i64: 12, 8>}, {pipeline_mode = #tpu.pipeline_mode<synchronous>, transform_indices = @transform_4, window_bounds = array<i64: 56, 64>}, {pipeline_mode = #tpu.pipeline_mode<synchronous>, transform_indices = @transform_5, window_bounds = array<i64: 3, 64>}, {pipeline_mode = #tpu.pipeline_mode<synchronous>, transform_indices = @transform_6, window_bounds = array<i64: 64, 16>}, {pipeline_mode = #tpu.pipeline_mode<synchronous>, transform_indices = @transform_7, window_bounds = array<i64: 16, 4>}, {transform_indices = @transform_8, window_bounds = array<i64: 2, 4>}]} {
    %c0 = arith.constant 0 : index
    %c0_0 = arith.constant 0 : index
    %0 = vector.load %arg4[%c0, %c0_0] : memref<12x8xf32, #tpu.memory_space<vmem>>, vector<12x8xf32>
    %1 = vector.extract_strided_slice %0 {offsets = [0, 0], sizes = [1, 8], strides = [1, 1]} : vector<12x8xf32> to vector<1x8xf32>
    %2 = vector.extract_strided_slice %0 {offsets = [1, 0], sizes = [1, 8], strides = [1, 1]} : vector<12x8xf32> to vector<1x8xf32>
    %3 = vector.extract_strided_slice %0 {offsets = [2, 0], sizes = [1, 8], strides = [1, 1]} : vector<12x8xf32> to vector<1x8xf32>
    %4 = vector.extract_strided_slice %0 {offsets = [3, 0], sizes = [1, 8], strides = [1, 1]} : vector<12x8xf32> to vector<1x8xf32>
    %5 = vector.extract_strided_slice %0 {offsets = [4, 0], sizes = [1, 8], strides = [1, 1]} : vector<12x8xf32> to vector<1x8xf32>
    %6 = vector.extract_strided_slice %0 {offsets = [5, 0], sizes = [1, 8], strides = [1, 1]} : vector<12x8xf32> to vector<1x8xf32>
    %7 = vector.extract_strided_slice %0 {offsets = [6, 0], sizes = [1, 8], strides = [1, 1]} : vector<12x8xf32> to vector<1x8xf32>
    %8 = vector.extract_strided_slice %0 {offsets = [7, 0], sizes = [1, 8], strides = [1, 1]} : vector<12x8xf32> to vector<1x8xf32>
    %9 = vector.extract_strided_slice %0 {offsets = [8, 0], sizes = [1, 8], strides = [1, 1]} : vector<12x8xf32> to vector<1x8xf32>
    %10 = vector.extract_strided_slice %0 {offsets = [9, 0], sizes = [1, 8], strides = [1, 1]} : vector<12x8xf32> to vector<1x8xf32>
    %11 = vector.extract_strided_slice %0 {offsets = [10, 0], sizes = [1, 8], strides = [1, 1]} : vector<12x8xf32> to vector<1x8xf32>
    %12 = vector.extract_strided_slice %0 {offsets = [11, 0], sizes = [1, 8], strides = [1, 1]} : vector<12x8xf32> to vector<1x8xf32>
    %c0_1 = arith.constant 0 : index
    %c0_2 = arith.constant 0 : index
    %c0_3 = arith.constant 0 : index
    %13 = vector.load %arg3[%c0_1, %c0_2, %c0_3] : memref<6x8x8xf32, #tpu.memory_space<vmem>>, vector<1x8x8xf32>
    %14 = vector.shape_cast %13 : vector<1x8x8xf32> to vector<8x8xf32>
    %c1 = arith.constant 1 : index
    %c0_4 = arith.constant 0 : index
    %c0_5 = arith.constant 0 : index
    %15 = vector.load %arg3[%c1, %c0_4, %c0_5] : memref<6x8x8xf32, #tpu.memory_space<vmem>>, vector<1x8x8xf32>
    %16 = vector.shape_cast %15 : vector<1x8x8xf32> to vector<8x8xf32>
    %c2 = arith.constant 2 : index
    %c0_6 = arith.constant 0 : index
    %c0_7 = arith.constant 0 : index
    %17 = vector.load %arg3[%c2, %c0_6, %c0_7] : memref<6x8x8xf32, #tpu.memory_space<vmem>>, vector<1x8x8xf32>
    %18 = vector.shape_cast %17 : vector<1x8x8xf32> to vector<8x8xf32>
    %c3 = arith.constant 3 : index
    %c0_8 = arith.constant 0 : index
    %c0_9 = arith.constant 0 : index
    %19 = vector.load %arg3[%c3, %c0_8, %c0_9] : memref<6x8x8xf32, #tpu.memory_space<vmem>>, vector<1x8x8xf32>
    %20 = vector.shape_cast %19 : vector<1x8x8xf32> to vector<8x8xf32>
    %c4 = arith.constant 4 : index
    %c0_10 = arith.constant 0 : index
    %c0_11 = arith.constant 0 : index
    %21 = vector.load %arg3[%c4, %c0_10, %c0_11] : memref<6x8x8xf32, #tpu.memory_space<vmem>>, vector<1x8x8xf32>
    %22 = vector.shape_cast %21 : vector<1x8x8xf32> to vector<8x8xf32>
    %c5 = arith.constant 5 : index
    %c0_12 = arith.constant 0 : index
    %c0_13 = arith.constant 0 : index
    %23 = vector.load %arg3[%c5, %c0_12, %c0_13] : memref<6x8x8xf32, #tpu.memory_space<vmem>>, vector<1x8x8xf32>
    %24 = vector.shape_cast %23 : vector<1x8x8xf32> to vector<8x8xf32>
    %c0_14 = arith.constant 0 : index
    %c0_15 = arith.constant 0 : index
    %c0_16 = arith.constant 0 : index
    %25 = vector.load %arg1[%c0_14, %c0_15, %c0_16] : memref<2x32x8xf32, #tpu.memory_space<vmem>>, vector<2x32x8xf32>
    %cst = arith.constant 2.82842708 : f32
    %26 = vector.broadcast %cst : f32 to vector<2x32x8xf32>
    %27 = arith.mulf %25, %26 : vector<2x32x8xf32>
    %c0_17 = arith.constant 0 : index
    %c0_18 = arith.constant 0 : index
    %c0_19 = arith.constant 0 : index
    %28 = vector.load %arg2[%c0_17, %c0_18, %c0_19] : memref<2x1x8xf32, #tpu.memory_space<vmem>>, vector<2x1x8xf32>
    %29 = vector.broadcast %28 : vector<2x1x8xf32> to vector<2x32x8xf32>
    %30 = arith.addf %27, %29 : vector<2x32x8xf32>
    %31 = vector.shape_cast %30 : vector<2x32x8xf32> to vector<64x8xf32>
    %cst_20 = arith.constant dense<0.000000e+00> : vector<64xf32>
    %32 = vector.multi_reduction <add>, %31, %cst_20 [1] : vector<64x8xf32> to vector<64xf32>
    %33 = vector.shape_cast %32 : vector<64xf32> to vector<64x1xf32>
    %cst_21 = arith.constant 8.000000e+00 : f32
    %34 = vector.broadcast %cst_21 : f32 to vector<64x1xf32>
    %35 = arith.divf %33, %34 : vector<64x1xf32>
    %36 = vector.broadcast %35 : vector<64x1xf32> to vector<64x8xf32>
    %37 = arith.subf %31, %36 : vector<64x8xf32>
    %38 = arith.mulf %37, %37 : vector<64x8xf32>
    %cst_22 = arith.constant dense<0.000000e+00> : vector<64xf32>
    %39 = vector.multi_reduction <add>, %38, %cst_22 [1] : vector<64x8xf32> to vector<64xf32>
    %40 = vector.shape_cast %39 : vector<64xf32> to vector<64x1xf32>
    %cst_23 = arith.constant 8.000000e+00 : f32
    %41 = vector.broadcast %cst_23 : f32 to vector<64x1xf32>
    %42 = arith.divf %40, %41 : vector<64x1xf32>
    %43 = vector.broadcast %35 : vector<64x1xf32> to vector<64x8xf32>
    %44 = arith.subf %31, %43 : vector<64x8xf32>
    %cst_24 = arith.constant 9.99999974E-6 : f32
    %45 = vector.broadcast %cst_24 : f32 to vector<64x1xf32>
    %46 = arith.addf %42, %45 : vector<64x1xf32>
    %47 = math.rsqrt %46 : vector<64x1xf32>
    %48 = vector.broadcast %47 : vector<64x1xf32> to vector<64x8xf32>
    %49 = arith.mulf %44, %48 : vector<64x8xf32>
    %50 = vector.broadcast %1 : vector<1x8xf32> to vector<64x8xf32>
    %51 = arith.mulf %49, %50 : vector<64x8xf32>
    %52 = vector.broadcast %2 : vector<1x8xf32> to vector<64x8xf32>
    %53 = arith.addf %51, %52 : vector<64x8xf32>
    %cst_25 = arith.constant dense<0.000000e+00> : vector<64x8xf32>
    %54 = tpu.matmul %53, %14, %cst_25 {dimension_numbers = #tpu.dot_dimension_numbers<[1], [0], [0], [1], [0, 0, 1, 1], [], []>} : vector<64x8xf32>, vector<8x8xf32>, vector<64x8xf32> -> vector<64x8xf32>
    %55 = vector.broadcast %3 : vector<1x8xf32> to vector<64x8xf32>
    %56 = arith.addf %54, %55 : vector<64x8xf32>
    %cst_26 = arith.constant 0.353553385 : f32
    %57 = vector.broadcast %cst_26 : f32 to vector<64x8xf32>
    %58 = arith.mulf %56, %57 : vector<64x8xf32>
    %cst_27 = arith.constant dense<0.000000e+00> : vector<64x8xf32>
    %59 = tpu.matmul %53, %16, %cst_27 {dimension_numbers = #tpu.dot_dimension_numbers<[1], [0], [0], [1], [0, 0, 1, 1], [], []>} : vector<64x8xf32>, vector<8x8xf32>, vector<64x8xf32> -> vector<64x8xf32>
    %60 = vector.broadcast %4 : vector<1x8xf32> to vector<64x8xf32>
    %61 = arith.addf %59, %60 : vector<64x8xf32>
    %cst_28 = arith.constant dense<0.000000e+00> : vector<64x8xf32>
    %62 = tpu.matmul %53, %18, %cst_28 {dimension_numbers = #tpu.dot_dimension_numbers<[1], [0], [0], [1], [0, 0, 1, 1], [], []>} : vector<64x8xf32>, vector<8x8xf32>, vector<64x8xf32> -> vector<64x8xf32>
    %63 = vector.broadcast %5 : vector<1x8xf32> to vector<64x8xf32>
    %64 = arith.addf %62, %63 : vector<64x8xf32>
    %65 = vector.shape_cast %58 : vector<64x8xf32> to vector<2x32x8xf32>
    %66 = vector.shape_cast %61 : vector<64x8xf32> to vector<2x32x8xf32>
    %67 = vector.shape_cast %64 : vector<64x8xf32> to vector<2x32x8xf32>
    "tpu.trace_start"() <{level = 10 : i32, message = "bqc,bkc->bqk"}> : () -> ()
    %cst_29 = arith.constant dense<0.000000e+00> : vector<2x32x32xf32>
    %68 = tpu.matmul %65, %66, %cst_29 {dimension_numbers = #tpu.dot_dimension_numbers<[2], [2], [1], [1], [0, 0, 0, 1, 1, 1], [0], [0]>} : vector<2x32x8xf32>, vector<2x32x8xf32>, vector<2x32x32xf32> -> vector<2x32x32xf32>
    "tpu.trace_stop"() : () -> ()
    %cst_30 = arith.constant 0.176776692 : f32
    %69 = vector.broadcast %cst_30 : f32 to vector<2x32x32xf32>
    %70 = arith.mulf %68, %69 : vector<2x32x32xf32>
    %cst_31 = arith.constant dense<0xFF800000> : vector<2x32xf32>
    %71 = vector.multi_reduction <maximumf>, %70, %cst_31 [2] : vector<2x32x32xf32> to vector<2x32xf32>
    %72 = vector.shape_cast %71 : vector<2x32xf32> to vector<2x32x1xf32>
    %73 = vector.broadcast %72 : vector<2x32x1xf32> to vector<2x32x32xf32>
    %74 = arith.subf %70, %73 : vector<2x32x32xf32>
    %75 = math.exp %74 : vector<2x32x32xf32>
    %cst_32 = arith.constant dense<0.000000e+00> : vector<2x32xf32>
    %76 = vector.multi_reduction <add>, %75, %cst_32 [2] : vector<2x32x32xf32> to vector<2x32xf32>
    %77 = vector.shape_cast %76 : vector<2x32xf32> to vector<2x32x1xf32>
    %78 = tpu.reciprocal %77 {approx = true} : vector<2x32x1xf32> -> vector<2x32x1xf32>
    %79 = vector.broadcast %78 : vector<2x32x1xf32> to vector<2x32x32xf32>
    %80 = arith.mulf %75, %79 : vector<2x32x32xf32>
    "tpu.trace_start"() <{level = 10 : i32, message = "bqk,bkc->bqc"}> : () -> ()
    %cst_33 = arith.constant dense<0.000000e+00> : vector<2x32x8xf32>
    %81 = tpu.matmul %80, %67, %cst_33 {dimension_numbers = #tpu.dot_dimension_numbers<[2], [1], [1], [2], [0, 0, 0, 1, 1, 2], [0], [0]>} : vector<2x32x32xf32>, vector<2x32x8xf32>, vector<2x32x8xf32> -> vector<2x32x8xf32>
    "tpu.trace_stop"() : () -> ()
    %82 = vector.shape_cast %81 : vector<2x32x8xf32> to vector<64x8xf32>
    %cst_34 = arith.constant dense<0.000000e+00> : vector<64x8xf32>
    %83 = tpu.matmul %82, %20, %cst_34 {dimension_numbers = #tpu.dot_dimension_numbers<[1], [0], [0], [1], [0, 0, 1, 1], [], []>} : vector<64x8xf32>, vector<8x8xf32>, vector<64x8xf32> -> vector<64x8xf32>
    %84 = vector.broadcast %6 : vector<1x8xf32> to vector<64x8xf32>
    %85 = arith.addf %83, %84 : vector<64x8xf32>
    %86 = arith.addf %31, %85 : vector<64x8xf32>
    %cst_35 = arith.constant dense<0.000000e+00> : vector<64xf32>
    %87 = vector.multi_reduction <add>, %86, %cst_35 [1] : vector<64x8xf32> to vector<64xf32>
    %88 = vector.shape_cast %87 : vector<64xf32> to vector<64x1xf32>
    %cst_36 = arith.constant 8.000000e+00 : f32
    %89 = vector.broadcast %cst_36 : f32 to vector<64x1xf32>
    %90 = arith.divf %88, %89 : vector<64x1xf32>
    %91 = vector.broadcast %90 : vector<64x1xf32> to vector<64x8xf32>
    %92 = arith.subf %86, %91 : vector<64x8xf32>
    %93 = arith.mulf %92, %92 : vector<64x8xf32>
    %cst_37 = arith.constant dense<0.000000e+00> : vector<64xf32>
    %94 = vector.multi_reduction <add>, %93, %cst_37 [1] : vector<64x8xf32> to vector<64xf32>
    %95 = vector.shape_cast %94 : vector<64xf32> to vector<64x1xf32>
    %cst_38 = arith.constant 8.000000e+00 : f32
    %96 = vector.broadcast %cst_38 : f32 to vector<64x1xf32>
    %97 = arith.divf %95, %96 : vector<64x1xf32>
    %98 = vector.broadcast %90 : vector<64x1xf32> to vector<64x8xf32>
    %99 = arith.subf %86, %98 : vector<64x8xf32>
    %cst_39 = arith.constant 9.99999974E-6 : f32
    %100 = vector.broadcast %cst_39 : f32 to vector<64x1xf32>
    %101 = arith.addf %97, %100 : vector<64x1xf32>
    %102 = math.rsqrt %101 : vector<64x1xf32>
    %103 = vector.broadcast %102 : vector<64x1xf32> to vector<64x8xf32>
    %104 = arith.mulf %99, %103 : vector<64x8xf32>
    %105 = vector.broadcast %7 : vector<1x8xf32> to vector<64x8xf32>
    %106 = arith.mulf %104, %105 : vector<64x8xf32>
    %107 = vector.broadcast %8 : vector<1x8xf32> to vector<64x8xf32>
    %108 = arith.addf %106, %107 : vector<64x8xf32>
    %cst_40 = arith.constant dense<0.000000e+00> : vector<64x8xf32>
    %109 = tpu.matmul %108, %22, %cst_40 {dimension_numbers = #tpu.dot_dimension_numbers<[1], [0], [0], [1], [0, 0, 1, 1], [], []>} : vector<64x8xf32>, vector<8x8xf32>, vector<64x8xf32> -> vector<64x8xf32>
    %110 = vector.broadcast %9 : vector<1x8xf32> to vector<64x8xf32>
    %111 = arith.addf %109, %110 : vector<64x8xf32>
    %cst_41 = arith.constant 0.000000e+00 : f32
    %112 = vector.broadcast %cst_41 : f32 to vector<64x8xf32>
    %113 = arith.maximumf %111, %112 : vector<64x8xf32>
    %cst_42 = arith.constant dense<0.000000e+00> : vector<64x8xf32>
    %114 = tpu.matmul %113, %24, %cst_42 {dimension_numbers = #tpu.dot_dimension_numbers<[1], [0], [0], [1], [0, 0, 1, 1], [], []>} : vector<64x8xf32>, vector<8x8xf32>, vector<64x8xf32> -> vector<64x8xf32>
    %115 = vector.broadcast %10 : vector<1x8xf32> to vector<64x8xf32>
    %116 = arith.addf %114, %115 : vector<64x8xf32>
    %117 = arith.addf %86, %116 : vector<64x8xf32>
    %cst_43 = arith.constant dense<0.000000e+00> : vector<64xf32>
    %118 = vector.multi_reduction <add>, %117, %cst_43 [1] : vector<64x8xf32> to vector<64xf32>
    %119 = vector.shape_cast %118 : vector<64xf32> to vector<64x1xf32>
    %cst_44 = arith.constant 8.000000e+00 : f32
    %120 = vector.broadcast %cst_44 : f32 to vector<64x1xf32>
    %121 = arith.divf %119, %120 : vector<64x1xf32>
    %122 = vector.broadcast %121 : vector<64x1xf32> to vector<64x8xf32>
    %123 = arith.subf %117, %122 : vector<64x8xf32>
    %124 = arith.mulf %123, %123 : vector<64x8xf32>
    %cst_45 = arith.constant dense<0.000000e+00> : vector<64xf32>
    %125 = vector.multi_reduction <add>, %124, %cst_45 [1] : vector<64x8xf32> to vector<64xf32>
    %126 = vector.shape_cast %125 : vector<64xf32> to vector<64x1xf32>
    %cst_46 = arith.constant 8.000000e+00 : f32
    %127 = vector.broadcast %cst_46 : f32 to vector<64x1xf32>
    %128 = arith.divf %126, %127 : vector<64x1xf32>
    %129 = vector.broadcast %121 : vector<64x1xf32> to vector<64x8xf32>
    %130 = arith.subf %117, %129 : vector<64x8xf32>
    %cst_47 = arith.constant 9.99999974E-6 : f32
    %131 = vector.broadcast %cst_47 : f32 to vector<64x1xf32>
    %132 = arith.addf %128, %131 : vector<64x1xf32>
    %133 = math.rsqrt %132 : vector<64x1xf32>
    %134 = vector.broadcast %133 : vector<64x1xf32> to vector<64x8xf32>
    %135 = arith.mulf %130, %134 : vector<64x8xf32>
    %136 = vector.broadcast %11 : vector<1x8xf32> to vector<64x8xf32>
    %137 = arith.mulf %135, %136 : vector<64x8xf32>
    %138 = vector.broadcast %12 : vector<1x8xf32> to vector<64x8xf32>
    %139 = arith.addf %137, %138 : vector<64x8xf32>
    %140 = vector.shape_cast %139 : vector<64x8xf32> to vector<2x32x8xf32>
    %141 = vector.extract_strided_slice %140 {offsets = [0, 1, 0], sizes = [2, 31, 8], strides = [1, 1, 1]} : vector<2x32x8xf32> to vector<2x31x8xf32>
    %142 = vector.extract_strided_slice %140 {offsets = [0, 0, 0], sizes = [2, 1, 8], strides = [1, 1, 1]} : vector<2x32x8xf32> to vector<2x1x8xf32>
    %143 = tpu.concatenate %141, %142 in 1 : vector<2x31x8xf32>, vector<2x1x8xf32> -> vector<2x32x8xf32>
    %144 = vector.extract_strided_slice %140 {offsets = [0, 2, 0], sizes = [2, 30, 8], strides = [1, 1, 1]} : vector<2x32x8xf32> to vector<2x30x8xf32>
    %145 = vector.extract_strided_slice %140 {offsets = [0, 0, 0], sizes = [2, 2, 8], strides = [1, 1, 1]} : vector<2x32x8xf32> to vector<2x2x8xf32>
    %146 = tpu.concatenate %144, %145 in 1 : vector<2x30x8xf32>, vector<2x2x8xf32> -> vector<2x32x8xf32>
    %147 = vector.extract_strided_slice %140 {offsets = [0, 3, 0], sizes = [2, 29, 8], strides = [1, 1, 1]} : vector<2x32x8xf32> to vector<2x29x8xf32>
    %148 = vector.extract_strided_slice %140 {offsets = [0, 0, 0], sizes = [2, 3, 8], strides = [1, 1, 1]} : vector<2x32x8xf32> to vector<2x3x8xf32>
    %149 = tpu.concatenate %147, %148 in 1 : vector<2x29x8xf32>, vector<2x3x8xf32> -> vector<2x32x8xf32>
    %150 = vector.extract_strided_slice %140 {offsets = [0, 4, 0], sizes = [2, 28, 8], strides = [1, 1, 1]} : vector<2x32x8xf32> to vector<2x28x8xf32>
    %151 = vector.extract_strided_slice %140 {offsets = [0, 0, 0], sizes = [2, 4, 8], strides = [1, 1, 1]} : vector<2x32x8xf32> to vector<2x4x8xf32>
    %152 = tpu.concatenate %150, %151 in 1 : vector<2x28x8xf32>, vector<2x4x8xf32> -> vector<2x32x8xf32>
    %153 = vector.extract_strided_slice %140 {offsets = [0, 5, 0], sizes = [2, 27, 8], strides = [1, 1, 1]} : vector<2x32x8xf32> to vector<2x27x8xf32>
    %154 = vector.extract_strided_slice %140 {offsets = [0, 0, 0], sizes = [2, 5, 8], strides = [1, 1, 1]} : vector<2x32x8xf32> to vector<2x5x8xf32>
    %155 = tpu.concatenate %153, %154 in 1 : vector<2x27x8xf32>, vector<2x5x8xf32> -> vector<2x32x8xf32>
    %156 = vector.extract_strided_slice %140 {offsets = [0, 6, 0], sizes = [2, 26, 8], strides = [1, 1, 1]} : vector<2x32x8xf32> to vector<2x26x8xf32>
    %157 = vector.extract_strided_slice %140 {offsets = [0, 0, 0], sizes = [2, 6, 8], strides = [1, 1, 1]} : vector<2x32x8xf32> to vector<2x6x8xf32>
    %158 = tpu.concatenate %156, %157 in 1 : vector<2x26x8xf32>, vector<2x6x8xf32> -> vector<2x32x8xf32>
    %159 = tpu.concatenate %140, %143, %146, %149, %152, %155, %158 in 2 : vector<2x32x8xf32>, vector<2x32x8xf32>, vector<2x32x8xf32>, vector<2x32x8xf32>, vector<2x32x8xf32>, vector<2x32x8xf32>, vector<2x32x8xf32> -> vector<2x32x56xf32>
    %160 = vector.shape_cast %159 : vector<2x32x56xf32> to vector<64x56xf32>
    %c0_48 = arith.constant 0 : index
    %c0_49 = arith.constant 0 : index
    %161 = vector.load %arg6[%c0_48, %c0_49] : memref<3x64xf32, #tpu.memory_space<vmem>>, vector<3x64xf32>
    %c0_50 = arith.constant 0 : index
    %c0_51 = arith.constant 0 : index
    %162 = vector.load %arg5[%c0_50, %c0_51] : memref<56x64xf32, #tpu.memory_space<vmem>>, vector<56x64xf32>
    %cst_52 = arith.constant dense<0.000000e+00> : vector<64x64xf32>
    %163 = tpu.matmul %160, %162, %cst_52 {dimension_numbers = #tpu.dot_dimension_numbers<[1], [0], [0], [1], [0, 0, 1, 1], [], []>} : vector<64x56xf32>, vector<56x64xf32>, vector<64x64xf32> -> vector<64x64xf32>
    %164 = vector.extract_strided_slice %161 {offsets = [0, 0], sizes = [1, 64], strides = [1, 1]} : vector<3x64xf32> to vector<1x64xf32>
    %165 = vector.broadcast %164 : vector<1x64xf32> to vector<64x64xf32>
    %166 = arith.addf %163, %165 : vector<64x64xf32>
    %cst_53 = arith.constant 0.000000e+00 : f32
    %167 = vector.broadcast %cst_53 : f32 to vector<64x64xf32>
    %168 = arith.maximumf %166, %167 : vector<64x64xf32>
    %169 = vector.shape_cast %168 : vector<64x64xf32> to vector<2x32x64xf32>
    %170 = tpu.iota {dimensions = array<i32: 1>} : vector<1x32x1xi32>
    %c26_i32 = arith.constant 26 : i32
    %171 = vector.broadcast %c26_i32 : i32 to vector<1x32x1xi32>
    %172 = arith.cmpi slt, %170, %171 : vector<1x32x1xi32>
    %173 = arith.extui %172 : vector<1x32x1xi1> to vector<1x32x1xi32>
    %174 = arith.sitofp %173 : vector<1x32x1xi32> to vector<1x32x1xf32>
    %175 = vector.broadcast %174 : vector<1x32x1xf32> to vector<2x32x64xf32>
    %176 = arith.mulf %169, %175 : vector<2x32x64xf32>
    %cst_54 = arith.constant dense<0.000000e+00> : vector<2x64xf32>
    %177 = vector.multi_reduction <add>, %176, %cst_54 [1] : vector<2x32x64xf32> to vector<2x64xf32>
    %cst_55 = arith.constant 0.0384615399 : f32
    %178 = vector.broadcast %cst_55 : f32 to vector<2x64xf32>
    %179 = arith.mulf %177, %178 : vector<2x64xf32>
    %c0_56 = arith.constant 0 : index
    %c0_57 = arith.constant 0 : index
    %180 = vector.load %arg7[%c0_56, %c0_57] : memref<64x16xf32, #tpu.memory_space<vmem>>, vector<64x16xf32>
    %cst_58 = arith.constant dense<0.000000e+00> : vector<2x16xf32>
    %181 = tpu.matmul %179, %180, %cst_58 {dimension_numbers = #tpu.dot_dimension_numbers<[1], [0], [0], [1], [0, 0, 1, 1], [], []>} : vector<2x64xf32>, vector<64x16xf32>, vector<2x16xf32> -> vector<2x16xf32>
    %182 = vector.extract_strided_slice %161 {offsets = [1, 0], sizes = [1, 16], strides = [1, 1]} : vector<3x64xf32> to vector<1x16xf32>
    %183 = vector.broadcast %182 : vector<1x16xf32> to vector<2x16xf32>
    %184 = arith.addf %181, %183 : vector<2x16xf32>
    %185 = arith.negf %184 : vector<2x16xf32>
    %186 = math.exp %185 : vector<2x16xf32>
    %cst_59 = arith.constant 1.000000e+00 : f32
    %187 = vector.broadcast %cst_59 : f32 to vector<2x16xf32>
    %188 = arith.addf %187, %186 : vector<2x16xf32>
    %189 = arith.divf %187, %188 : vector<2x16xf32>
    %c0_60 = arith.constant 0 : index
    %c0_61 = arith.constant 0 : index
    %190 = vector.load %arg8[%c0_60, %c0_61] : memref<16x4xf32, #tpu.memory_space<vmem>>, vector<16x4xf32>
    %cst_62 = arith.constant dense<0.000000e+00> : vector<2x4xf32>
    %191 = tpu.matmul %189, %190, %cst_62 {dimension_numbers = #tpu.dot_dimension_numbers<[1], [0], [0], [1], [0, 0, 1, 1], [], []>} : vector<2x16xf32>, vector<16x4xf32>, vector<2x4xf32> -> vector<2x4xf32>
    %192 = vector.extract_strided_slice %161 {offsets = [2, 0], sizes = [1, 4], strides = [1, 1]} : vector<3x64xf32> to vector<1x4xf32>
    %193 = vector.broadcast %192 : vector<1x4xf32> to vector<2x4xf32>
    %194 = arith.addf %191, %193 : vector<2x4xf32>
    %cst_63 = arith.constant 0.000000e+00 : f32
    %195 = vector.broadcast %cst_63 : f32 to vector<2x4xf32>
    %196 = arith.maximumf %194, %195 : vector<2x4xf32>
    %c0_64 = arith.constant 0 : index
    %c0_65 = arith.constant 0 : index
    %197 = vector.load %arg9[%c0_64, %c0_65] : memref<2x4xf32, #tpu.memory_space<vmem>>, vector<2x4xf32>
    tpu.vector_store %arg9[%c0_64, %c0_65], %196 {strides = array<i32>} : memref<2x4xf32, #tpu.memory_space<vmem>>, vector<2x4xf32>,
    return
  }
  func.func @transform_0(%arg0: i32) -> (i32, i32, i32) {
    %c0_i32 = arith.constant 0 : i32
    %c0_i32_0 = arith.constant 0 : i32
    %c0_i32_1 = arith.constant 0 : i32
    return %arg0, %c0_i32, %c0_i32_0 : i32, i32, i32
  }
  func.func @transform_1(%arg0: i32) -> (i32, i32, i32) {
    %c0_i32 = arith.constant 0 : i32
    %c0_i32_0 = arith.constant 0 : i32
    %c0_i32_1 = arith.constant 0 : i32
    return %arg0, %c0_i32, %c0_i32_0 : i32, i32, i32
  }
  func.func @transform_2(%arg0: i32) -> (i32, i32, i32) {
    %c0_i32 = arith.constant 0 : i32
    %c0_i32_0 = arith.constant 0 : i32
    %c0_i32_1 = arith.constant 0 : i32
    %c0_i32_2 = arith.constant 0 : i32
    return %c0_i32, %c0_i32_0, %c0_i32_1 : i32, i32, i32
  }
  func.func @transform_3(%arg0: i32) -> (i32, i32) {
    %c0_i32 = arith.constant 0 : i32
    %c0_i32_0 = arith.constant 0 : i32
    %c0_i32_1 = arith.constant 0 : i32
    return %c0_i32, %c0_i32_0 : i32, i32
  }
  func.func @transform_4(%arg0: i32) -> (i32, i32) {
    %c0_i32 = arith.constant 0 : i32
    %c0_i32_0 = arith.constant 0 : i32
    %c0_i32_1 = arith.constant 0 : i32
    return %c0_i32, %c0_i32_0 : i32, i32
  }
  func.func @transform_5(%arg0: i32) -> (i32, i32) {
    %c0_i32 = arith.constant 0 : i32
    %c0_i32_0 = arith.constant 0 : i32
    %c0_i32_1 = arith.constant 0 : i32
    return %c0_i32, %c0_i32_0 : i32, i32
  }
  func.func @transform_6(%arg0: i32) -> (i32, i32) {
    %c0_i32 = arith.constant 0 : i32
    %c0_i32_0 = arith.constant 0 : i32
    %c0_i32_1 = arith.constant 0 : i32
    return %c0_i32, %c0_i32_0 : i32, i32
  }
  func.func @transform_7(%arg0: i32) -> (i32, i32) {
    %c0_i32 = arith.constant 0 : i32
    %c0_i32_0 = arith.constant 0 : i32
    %c0_i32_1 = arith.constant 0 : i32
    return %c0_i32, %c0_i32_0 : i32, i32
  }
  func.func @transform_8(%arg0: i32) -> (i32, i32) {
    %c0_i32 = arith.constant 0 : i32
    %c0_i32_0 = arith.constant 0 : i32
    return %arg0, %c0_i32 : i32, i32
  }
}

</mosaic_0001>

<llo_original>
// kernel: tabnet_forward.1
$region0: #{tabnet_forward.1}
  #allocation0 [shape = 'u32[]', space=smem, size = 0x4, offset = 0x4, fixed_abs, tag = 'smem constant byte address 0x4 - core index']
  #allocation1 [shape = 'u32[144,128]{1,0:T(1,128)}', space=vmem, size = 0x12000, scoped, tag = 'internal scratch']
  %s0 = inlined_call_operand.vmem [shape: f32[2,32,8], index: 0, kind: input, shape index: {}]
  %s1 = inlined_call_operand.vmem [shape: f32[2,1,8], index: 1, kind: input, shape index: {}]
  %s2 = inlined_call_operand.vmem [shape: f32[6,8,8], index: 2, kind: input, shape index: {}]
  %s3 = inlined_call_operand.vmem [shape: f32[12,8], index: 3, kind: input, shape index: {}]
  %s4 = inlined_call_operand.vmem [shape: f32[56,64], index: 4, kind: input, shape index: {}]
  %s5 = inlined_call_operand.vmem [shape: f32[3,64], index: 5, kind: input, shape index: {}]
  %s6 = inlined_call_operand.vmem [shape: f32[64,16], index: 6, kind: input, shape index: {}]
  %s7 = inlined_call_operand.vmem [shape: f32[16,4], index: 7, kind: input, shape index: {}]
  %s8 = inlined_call_operand.hbm [shape: f32[2,4], index: 8, kind: output, shape index: {}]
  %s9 = sld [smem:[#allocation0]]
  $region42: #{tabnet_forward.1} parent=0
    _
  %s11 = ssub.s32 1, %s9
  %s12 = scalar_select 0, %s11, %s9
  $region1: #{tabnet_forward.1} parent=0
    #allocation2 [shape = 'u8[1024]{0}', space=vmem, size = 0x400, scoped, tag = 'output window, operand 0, single buffered']
    #allocation3 [shape = 's32[1]{0}', space=sflag, size = 0x4, scoped, tag = 'scoped memory for tabnet_forward.1']
    %13 = vsyncpa [#allocation3], 0
    // Predicated region
    $region2: #{tabnet_forward.1} parent=1 // pred_check
      _
    $region3: #{tabnet_forward.1} parent=1 // pred_check_branch
      %15 = sbr.rel (0) target = $region5
    $region4: #{tabnet_forward.1} parent=1 // pred_region
      _
    $region5: #{tabnet_forward.1} parent=1 // pred_fallthru
      _
    // Predicated region
    $region6: #{tabnet_forward.1} parent=1 // pred_check
      _
    $region7: #{tabnet_forward.1} parent=1 // pred_check_branch
      %17 = sbr.rel (0) target = $region9
    $region8: #{tabnet_forward.1} parent=1 // pred_region
      _
    $region9: #{tabnet_forward.1} parent=1 // pred_fallthru
      _
    // Predicated region
    $region10: #{tabnet_forward.1} parent=1 // pred_check
      _
    $region11: #{tabnet_forward.1} parent=1 // pred_check_branch
      %19 = sbr.rel (0) target = $region13
    $region12: #{tabnet_forward.1} parent=1 // pred_region
      _
    $region13: #{tabnet_forward.1} parent=1 // pred_fallthru
      _
    // Predicated region
    $region14: #{tabnet_forward.1} parent=1 // pred_check
      _
    $region15: #{tabnet_forward.1} parent=1 // pred_check_branch
      %21 = sbr.rel (0) target = $region17
    $region16: #{tabnet_forward.1} parent=1 // pred_region
      _
    $region17: #{tabnet_forward.1} parent=1 // pred_fallthru
      _
    // Predicated region
    $region18: #{tabnet_forward.1} parent=1 // pred_check
      _
    $region19: #{tabnet_forward.1} parent=1 // pred_check_branch
      %23 = sbr.rel (0) target = $region21
    $region20: #{tabnet_forward.1} parent=1 // pred_region
      _
    $region21: #{tabnet_forward.1} parent=1 // pred_fallthru
      _
    // Predicated region
    $region22: #{tabnet_forward.1} parent=1 // pred_check
      _
    $region23: #{tabnet_forward.1} parent=1 // pred_check_branch
      %25 = sbr.rel (0) target = $region25
    $region24: #{tabnet_forward.1} parent=1 // pred_region
      _
    $region25: #{tabnet_forward.1} parent=1 // pred_fallthru
      _
    // Predicated region
    $region26: #{tabnet_forward.1} parent=1 // pred_check
      _
    $region27: #{tabnet_forward.1} parent=1 // pred_check_branch
      %27 = sbr.rel (0) target = $region29
    $region28: #{tabnet_forward.1} parent=1 // pred_region
      _
    $region29: #{tabnet_forward.1} parent=1 // pred_fallthru
      _
    // Predicated region
    $region30: #{tabnet_forward.1} parent=1 // pred_check
      _
    $region31: #{tabnet_forward.1} parent=1 // pred_check_branch
      %29 = sbr.rel (0) target = $region33
    $region32: #{tabnet_forward.1} parent=1 // pred_region
      _
    $region33: #{tabnet_forward.1} parent=1 // pred_fallthru
      _
    %v30 = vld [vmem:[%s3] sm:$0xff]
    %v31 = vld [vmem:[%s3 + $0x8] sm:$0xf]
    %v32 = vld [vmem:[%s2] sm:$0xff]
    %s33 = scalar_lea.vmem %s2, 8
    %v34 = vld [vmem:[%s33] sm:$0xff]
    %s35 = scalar_lea.vmem %s2, 16
    %v36 = vld [vmem:[%s35] sm:$0xff]
    %s37 = scalar_lea.vmem %s2, 24
    %v38 = vld [vmem:[%s37] sm:$0xff]
    %s39 = scalar_lea.vmem %s2, 32
    %v40 = vld [vmem:[%s39] sm:$0xff]
    %s41 = scalar_lea.vmem %s2, 40
    %v42 = vld [vmem:[%s41] sm:$0xff]
    %v43 = vld [vmem:[%s0] sm:$0xff]
    %v44 = vld [vmem:[%s0 + $0x8] sm:$0xff]
    %v45 = vld [vmem:[%s0 + $0x10] sm:$0xff]
    %v46 = vld [vmem:[%s0 + $0x18] sm:$0xff]
    %v47 = vld [vmem:[%s0 + $0x20] sm:$0xff]
    %v48 = vld [vmem:[%s0 + $0x28] sm:$0xff]
    %v49 = vld [vmem:[%s0 + $0x30] sm:$0xff]
    %v50 = vld [vmem:[%s0 + $0x38] sm:$0xff]
    %v51 = vmul.f32 %v43, 2.828427
    %v52 = vmul.f32 %v44, 2.828427
    %v53 = vmul.f32 %v45, 2.828427
    %v54 = vmul.f32 %v46, 2.828427
    %v55 = vmul.f32 %v47, 2.828427
    %v56 = vmul.f32 %v48, 2.828427
    %v57 = vmul.f32 %v49, 2.828427
    %v58 = vmul.f32 %v50, 2.828427
    %v59 = vld [vmem:[%s1] sm:$0x1]
    %v60 = vld [vmem:[%s1 + $0x1] sm:$0x1]
    %v63 = vlaneseq
    %v64 = vshrl.u32 %v63, 7
    %v65 = vsub.s32 0, %v64
    %v66 = vrot.slane %v59, %v65
    %v67 = vlaneseq
    %v68 = vshrl.u32 %v67, 7
    %v69 = vsub.s32 0, %v68
    %v70 = vrot.slane %v60, %v69
    %v73 = vadd.f32 %v51, %v66
    %v74 = vadd.f32 %v52, %v66
    %v75 = vadd.f32 %v53, %v66
    %v76 = vadd.f32 %v54, %v66
    %v77 = vadd.f32 %v55, %v70
    %v78 = vadd.f32 %v56, %v70
    %v79 = vadd.f32 %v57, %v70
    %v80 = vadd.f32 %v58, %v70
    %vm81 = vcmask 64512
    %v82 = vsel %vm81, %v73, 0.0
    %83 = vadd.xlane.f32.xlu0 %v82
    %v84 = vpop.xlane.xlu0 %83
    %v85 = vsel %vm81, %v74, 0.0
    %86 = vadd.xlane.f32.xlu0 %v85
    %v87 = vpop.xlane.xlu0 %86
    %v88 = vsel %vm81, %v75, 0.0
    %89 = vadd.xlane.f32.xlu0 %v88
    %v90 = vpop.xlane.xlu0 %89
    %v91 = vsel %vm81, %v76, 0.0
    %92 = vadd.xlane.f32.xlu0 %v91
    %v93 = vpop.xlane.xlu0 %92
    %v94 = vsel %vm81, %v77, 0.0
    %95 = vadd.xlane.f32.xlu0 %v94
    %v96 = vpop.xlane.xlu0 %95
    %v97 = vsel %vm81, %v78, 0.0
    %98 = vadd.xlane.f32.xlu0 %v97
    %v99 = vpop.xlane.xlu0 %98
    %v100 = vsel %vm81, %v79, 0.0
    %101 = vadd.xlane.f32.xlu0 %v100
    %v102 = vpop.xlane.xlu0 %101
    %v103 = vsel %vm81, %v80, 0.0
    %104 = vadd.xlane.f32.xlu0 %v103
    %v105 = vpop.xlane.xlu0 %104
    %v106 = vrcp.pop 8.0
    %v107 = vmul.f32 %v84, %v106
    %v108 = vmul.f32 %v87, %v106
    %v109 = vmul.f32 %v90, %v106
    %v110 = vmul.f32 %v93, %v106
    %v111 = vmul.f32 %v96, %v106
    %v112 = vmul.f32 %v99, %v106
    %v113 = vmul.f32 %v102, %v106
    %v114 = vmul.f32 %v105, %v106
    %v115 = vsub.f32 %v73, %v107
    %v116 = vsub.f32 %v74, %v108
    %v117 = vsub.f32 %v75, %v109
    %v118 = vsub.f32 %v76, %v110
    %v119 = vsub.f32 %v77, %v111
    %v120 = vsub.f32 %v78, %v112
    %v121 = vsub.f32 %v79, %v113
    %v122 = vsub.f32 %v80, %v114
    %v123 = vmul.f32 %v115, %v115
    %v124 = vmul.f32 %v116, %v116
    %v125 = vmul.f32 %v117, %v117
    %v126 = vmul.f32 %v118, %v118
    %v127 = vmul.f32 %v119, %v119
    %v128 = vmul.f32 %v120, %v120
    %v129 = vmul.f32 %v121, %v121
    %v130 = vmul.f32 %v122, %v122
    %v131 = vsel %vm81, %v123, 0.0
    %132 = vadd.xlane.f32.xlu0 %v131
    %v133 = vpop.xlane.xlu0 %132
    %v134 = vsel %vm81, %v124, 0.0
    %135 = vadd.xlane.f32.xlu0 %v134
    %v136 = vpop.xlane.xlu0 %135
    %v137 = vsel %vm81, %v125, 0.0
    %138 = vadd.xlane.f32.xlu0 %v137
    %v139 = vpop.xlane.xlu0 %138
    %v140 = vsel %vm81, %v126, 0.0
    %141 = vadd.xlane.f32.xlu0 %v140
    %v142 = vpop.xlane.xlu0 %141
    %v143 = vsel %vm81, %v127, 0.0
    %144 = vadd.xlane.f32.xlu0 %v143
    %v145 = vpop.xlane.xlu0 %144
    %v146 = vsel %vm81, %v128, 0.0
    %147 = vadd.xlane.f32.xlu0 %v146
    %v148 = vpop.xlane.xlu0 %147
    %v149 = vsel %vm81, %v129, 0.0
    %150 = vadd.xlane.f32.xlu0 %v149
    %v151 = vpop.xlane.xlu0 %150
    %v152 = vsel %vm81, %v130, 0.0
    %153 = vadd.xlane.f32.xlu0 %v152
    %v154 = vpop.xlane.xlu0 %153
    %v155 = vmul.f32 %v133, %v106
    %v156 = vmul.f32 %v136, %v106
    %v157 = vmul.f32 %v139, %v106
    %v158 = vmul.f32 %v142, %v106
    %v159 = vmul.f32 %v145, %v106
    %v160 = vmul.f32 %v148, %v106
    %v161 = vmul.f32 %v151, %v106
    %v162 = vmul.f32 %v154, %v106
    %v163 = vadd.f32 %v155, 1e-05
    %v164 = vadd.f32 %v156, 1e-05
    %v165 = vadd.f32 %v157, 1e-05
    %v166 = vadd.f32 %v158, 1e-05
    %v167 = vadd.f32 %v159, 1e-05
    %v168 = vadd.f32 %v160, 1e-05
    %v169 = vadd.f32 %v161, 1e-05
    %v170 = vadd.f32 %v162, 1e-05
    %v171 = vrsqrt.pop %v163
    %v172 = vrsqrt.pop %v164
    %v173 = vrsqrt.pop %v165
    %v174 = vrsqrt.pop %v166
    %v175 = vrsqrt.pop %v167
    %v176 = vrsqrt.pop %v168
    %v177 = vrsqrt.pop %v169
    %v178 = vrsqrt.pop %v170
    %v179 = vmul.f32 %v115, %v171
    %v180 = vmul.f32 %v116, %v172
    %v181 = vmul.f32 %v117, %v173
    %v182 = vmul.f32 %v118, %v174
    %v183 = vmul.f32 %v119, %v175
    %v184 = vmul.f32 %v120, %v176
    %v185 = vmul.f32 %v121, %v177
    %v186 = vmul.f32 %v122, %v178
    %v187 = vlaneseq
    %v188 = vshrl.u32 %v187, 7
    %v189 = vsub.s32 0, %v188
    %v190 = vrot.slane %v30, %v189
    %v191 = vmul.f32 %v179, %v190
    %v192 = vmul.f32 %v180, %v190
    %v193 = vmul.f32 %v181, %v190
    %v194 = vmul.f32 %v182, %v190
    %v195 = vmul.f32 %v183, %v190
    %v196 = vmul.f32 %v184, %v190
    %v197 = vmul.f32 %v185, %v190
    %v198 = vmul.f32 %v186, %v190
    %v199 = vlaneseq
    %v200 = vshrl.u32 %v199, 7
    %v201 = vsub.s32 1, %v200
    %v202 = vrot.slane %v30, %v201
    %v203 = vadd.f32 %v191, %v202
    %v204 = vadd.f32 %v192, %v202
    %v205 = vadd.f32 %v193, %v202
    %v206 = vadd.f32 %v194, %v202
    %v207 = vadd.f32 %v195, %v202
    %v208 = vadd.f32 %v196, %v202
    %v209 = vadd.f32 %v197, %v202
    %v210 = vadd.f32 %v198, %v202
    %v211 = vlaneseq
    %v212 = vshrl.u32 %v211, 7
    %v213 = vsub.s32 2, %v212
    %v214 = vrot.slane %v30, %v213
    %v216 = vsel %vm81, %v203, 0
    %v219 = vsel %vm81, %v204, 0
    %v222 = vsel %vm81, %v205, 0
    %v225 = vsel %vm81, %v206, 0
    %v228 = vsel %vm81, %v207, 0
    %v231 = vsel %vm81, %v208, 0
    %v234 = vsel %vm81, %v209, 0
    %v237 = vsel %vm81, %v210, 0
    %239 = vmatprep.subr.mxu0 0.0
    %240 = vmatpush1.msra.mxu0 %v32
    %241 = vmatprep.subr.mxu0 0.0
    %242 = vmatpush1.msra.mxu0 0.0
    %243 = vmatprep.subr.mxu0 0.0
    %244 = vmatpush1.msra.mxu0 0.0
    %245 = vmatprep.subr.mxu0 0.0
    %246 = vmatpush1.msra.mxu0 0.0
    %247 = vmatprep.subr.mxu0 0.0
    %248 = vmatpush1.msra.mxu0 0.0
    %249 = vmatprep.subr.mxu0 0.0
    %250 = vmatpush1.msra.mxu0 0.0
    %251 = vmatprep.subr.mxu0 0.0
    %252 = vmatpush1.msra.mxu0 0.0
    %253 = vmatprep.subr.mxu0 0.0
    %254 = vmatpush1.msra.mxu0 0.0
    %255 = vmatprep.subr.mxu0 0.0
    %256 = vmatpush1.msra.mxu0 0.0
    %257 = vmatprep.subr.mxu0 0.0
    %258 = vmatpush1.msra.mxu0 0.0
    %259 = vmatprep.subr.mxu0 0.0
    %260 = vmatpush1.msra.mxu0 0.0
    %261 = vmatprep.subr.mxu0 0.0
    %262 = vmatpush1.msra.mxu0 0.0
    %263 = vmatprep.subr.mxu0 0.0
    %264 = vmatpush1.msra.mxu0 0.0
    %265 = vmatprep.subr.mxu0 0.0
    %266 = vmatpush1.msra.mxu0 0.0
    %267 = vmatprep.subr.mxu0 0.0
    %268 = vmatpush1.msra.mxu0 0.0
    %269 = vmatprep.subr.mxu0 0.0
    %270 = vmatpush1.msra.mxu0 0.0
    %271 = vmatprep.subr.mxu0 0.0
    %272 = vmatpush1.msra.mxu0 0.0
    %273 = vmatprep.subr.mxu0 0.0
    %274 = vmatpush1.msra.mxu0 0.0
    %275 = vmatprep.subr.mxu0 0.0
    %276 = vmatpush1.msra.mxu0 0.0
    %277 = vmatprep.subr.mxu0 0.0
    %278 = vmatpush1.msra.mxu0 0.0
    %279 = vmatprep.subr.mxu0 0.0
    %280 = vmatpush1.msra.mxu0 0.0
    %281 = vmatprep.subr.mxu0 0.0
    %282 = vmatpush1.msra.mxu0 0.0
    %283 = vmatprep.subr.mxu0 0.0
    %284 = vmatpush1.msra.mxu0 0.0
    %285 = vmatprep.subr.mxu0 0.0
    %286 = vmatpush1.msra.mxu0 0.0
    %287 = vmatprep.subr.mxu0 0.0
    %288 = vmatpush1.msra.mxu0 0.0
    %289 = vmatprep.subr.mxu0 0.0
    %290 = vmatpush1.msra.mxu0 0.0
    %291 = vmatprep.subr.mxu0 0.0
    %292 = vmatpush1.msra.mxu0 0.0
    %293 = vmatprep.subr.mxu0 0.0
    %294 = vmatpush1.msra.mxu0 0.0
    %295 = vmatprep.subr.mxu0 0.0
    %296 = vmatpush1.msra.mxu0 0.0
    %297 = vmatprep.subr.mxu0 0.0
    %298 = vmatpush1.msra.mxu0 0.0
    %299 = vmatprep.subr.mxu0 0.0
    %300 = vmatpush1.msra.mxu0 0.0
    %301 = vmatprep.subr.mxu0 0.0
    %302 = vmatpush1.msra.mxu0 0.0
    %303 = vmatprep.mubr.f32.mxu0 0.0
    %304 = vmatmul.mubr.f32.gmra.mrb[0].mxu0 %v216
    %v305 = vpop.f32.mrb[0].mxu0
    %v306 = vadd.f32 %v214, %v305
    %v307 = vpop.f32.mrb[0].mxu0
    %308 = vmatprep.mubr.f32.mxu0 0.0
    %309 = vmatmul.mubr.f32.gmra.mrb[0].mxu0 %v219
    %v310 = vpop.f32.mrb[0].mxu0
    %v311 = vadd.f32 %v214, %v310
    %v312 = vpop.f32.mrb[0].mxu0
    %313 = vmatprep.mubr.f32.mxu0 0.0
    %314 = vmatmul.mubr.f32.gmra.mrb[0].mxu0 %v222
    %v315 = vpop.f32.mrb[0].mxu0
    %v316 = vadd.f32 %v214, %v315
    %v317 = vpop.f32.mrb[0].mxu0
    %318 = vmatprep.mubr.f32.mxu0 0.0
    %319 = vmatmul.mubr.f32.gmra.mrb[0].mxu0 %v225
    %v320 = vpop.f32.mrb[0].mxu0
    %v321 = vadd.f32 %v214, %v320
    %v322 = vpop.f32.mrb[0].mxu0
    %323 = vmatprep.mubr.f32.mxu0 0.0
    %324 = vmatmul.mubr.f32.gmra.mrb[0].mxu0 %v228
    %v325 = vpop.f32.mrb[0].mxu0
    %v326 = vadd.f32 %v214, %v325
    %v327 = vpop.f32.mrb[0].mxu0
    %328 = vmatprep.mubr.f32.mxu0 0.0
    %329 = vmatmul.mubr.f32.gmra.mrb[0].mxu0 %v231
    %v330 = vpop.f32.mrb[0].mxu0
    %v331 = vadd.f32 %v214, %v330
    %v332 = vpop.f32.mrb[0].mxu0
    %333 = vmatprep.mubr.f32.mxu0 0.0
    %334 = vmatmul.mubr.f32.gmra.mrb[0].mxu0 %v234
    %v335 = vpop.f32.mrb[0].mxu0
    %v336 = vadd.f32 %v214, %v335
    %v337 = vpop.f32.mrb[0].mxu0
    %338 = vmatprep.mubr.f32.mxu0 0.0
    %339 = vmatmul.mubr.f32.gmra.mrb[0].mxu0 %v237
    %v340 = vpop.f32.mrb[0].mxu0
    %v341 = vadd.f32 %v214, %v340
    %v342 = vpop.f32.mrb[0].mxu0
    %343 = vdwg.mxu0
    %v344 = vmul.f32 %v306, 0.35355338
    %v345 = vmul.f32 %v311, 0.35355338
    %v346 = vmul.f32 %v316, 0.35355338
    %v347 = vmul.f32 %v321, 0.35355338
    %v348 = vmul.f32 %v326, 0.35355338
    %v349 = vmul.f32 %v331, 0.35355338
    %v350 = vmul.f32 %v336, 0.35355338
    %v351 = vmul.f32 %v341, 0.35355338
    %v352 = vlaneseq
    %v353 = vshrl.u32 %v352, 7
    %v354 = vsub.s32 3, %v353
    %v355 = vrot.slane %v30, %v354
    %356 = vmatprep.subr.mxu0 0.0
    %357 = vmatpush1.msra.mxu0 %v34
    %358 = vmatprep.subr.mxu0 0.0
    %359 = vmatpush1.msra.mxu0 0.0
    %360 = vmatprep.subr.mxu0 0.0
    %361 = vmatpush1.msra.mxu0 0.0
    %362 = vmatprep.subr.mxu0 0.0
    %363 = vmatpush1.msra.mxu0 0.0
    %364 = vmatprep.subr.mxu0 0.0
    %365 = vmatpush1.msra.mxu0 0.0
    %366 = vmatprep.subr.mxu0 0.0
    %367 = vmatpush1.msra.mxu0 0.0
    %368 = vmatprep.subr.mxu0 0.0
    %369 = vmatpush1.msra.mxu0 0.0
    %370 = vmatprep.subr.mxu0 0.0
    %371 = vmatpush1.msra.mxu0 0.0
    %372 = vmatprep.subr.mxu0 0.0
    %373 = vmatpush1.msra.mxu0 0.0
    %374 = vmatprep.subr.mxu0 0.0
    %375 = vmatpush1.msra.mxu0 0.0
    %376 = vmatprep.subr.mxu0 0.0
    %377 = vmatpush1.msra.mxu0 0.0
    %378 = vmatprep.subr.mxu0 0.0
    %379 = vmatpush1.msra.mxu0 0.0
    %380 = vmatprep.subr.mxu0 0.0
    %381 = vmatpush1.msra.mxu0 0.0
    %382 = vmatprep.subr.mxu0 0.0
    %383 = vmatpush1.msra.mxu0 0.0
    %384 = vmatprep.subr.mxu0 0.0
    %385 = vmatpush1.msra.mxu0 0.0
    %386 = vmatprep.subr.mxu0 0.0
    %387 = vmatpush1.msra.mxu0 0.0
    %388 = vmatprep.subr.mxu0 0.0
    %389 = vmatpush1.msra.mxu0 0.0
    %390 = vmatprep.subr.mxu0 0.0
    %391 = vmatpush1.msra.mxu0 0.0
    %392 = vmatprep.subr.mxu0 0.0
    %393 = vmatpush1.msra.mxu0 0.0
    %394 = vmatprep.subr.mxu0 0.0
    %395 = vmatpush1.msra.mxu0 0.0
    %396 = vmatprep.subr.mxu0 0.0
    %397 = vmatpush1.msra.mxu0 0.0
    %398 = vmatprep.subr.mxu0 0.0
    %399 = vmatpush1.msra.mxu0 0.0
    %400 = vmatprep.subr.mxu0 0.0
    %401 = vmatpush1.msra.mxu0 0.0
    %402 = vmatprep.subr.mxu0 0.0
    %403 = vmatpush1.msra.mxu0 0.0
    %404 = vmatprep.subr.mxu0 0.0
    %405 = vmatpush1.msra.mxu0 0.0
    %406 = vmatprep.subr.mxu0 0.0
    %407 = vmatpush1.msra.mxu0 0.0
    %408 = vmatprep.subr.mxu0 0.0
    %409 = vmatpush1.msra.mxu0 0.0
    %410 = vmatprep.subr.mxu0 0.0
    %411 = vmatpush1.msra.mxu0 0.0
    %412 = vmatprep.subr.mxu0 0.0
    %413 = vmatpush1.msra.mxu0 0.0
    %414 = vmatprep.subr.mxu0 0.0
    %415 = vmatpush1.msra.mxu0 0.0
    %416 = vmatprep.subr.mxu0 0.0
    %417 = vmatpush1.msra.mxu0 0.0
    %418 = vmatprep.subr.mxu0 0.0
    %419 = vmatpush1.msra.mxu0 0.0
    %420 = vmatprep.mubr.f32.mxu0 0.0
    %421 = vmatmul.mubr.f32.gmra.mrb[0].mxu0 %v216
    %v422 = vpop.f32.mrb[0].mxu0
    %v423 = vadd.f32 %v355, %v422
    %v424 = vpop.f32.mrb[0].mxu0
    %425 = vmatprep.mubr.f32.mxu0 0.0
    %426 = vmatmul.mubr.f32.gmra.mrb[0].mxu0 %v219
    %v427 = vpop.f32.mrb[0].mxu0
    %v428 = vadd.f32 %v355, %v427
    %v429 = vpop.f32.mrb[0].mxu0
    %430 = vmatprep.mubr.f32.mxu0 0.0
    %431 = vmatmul.mubr.f32.gmra.mrb[0].mxu0 %v222
    %v432 = vpop.f32.mrb[0].mxu0
    %v433 = vadd.f32 %v355, %v432
    %v434 = vpop.f32.mrb[0].mxu0
    %435 = vmatprep.mubr.f32.mxu0 0.0
    %436 = vmatmul.mubr.f32.gmra.mrb[0].mxu0 %v225
    %v437 = vpop.f32.mrb[0].mxu0
    %v438 = vadd.f32 %v355, %v437
    %v439 = vpop.f32.mrb[0].mxu0
    %440 = vmatprep.mubr.f32.mxu0 0.0
    %441 = vmatmul.mubr.f32.gmra.mrb[0].mxu0 %v228
    %v442 = vpop.f32.mrb[0].mxu0
    %v443 = vadd.f32 %v355, %v442
    %v444 = vpop.f32.mrb[0].mxu0
    %445 = vmatprep.mubr.f32.mxu0 0.0
    %446 = vmatmul.mubr.f32.gmra.mrb[0].mxu0 %v231
    %v447 = vpop.f32.mrb[0].mxu0
    %v448 = vadd.f32 %v355, %v447
    %v449 = vpop.f32.mrb[0].mxu0
    %450 = vmatprep.mubr.f32.mxu0 0.0
    %451 = vmatmul.mubr.f32.gmra.mrb[0].mxu0 %v234
    %v452 = vpop.f32.mrb[0].mxu0
    %v453 = vadd.f32 %v355, %v452
    %v454 = vpop.f32.mrb[0].mxu0
    %455 = vmatprep.mubr.f32.mxu0 0.0
    %456 = vmatmul.mubr.f32.gmra.mrb[0].mxu0 %v237
    %v457 = vpop.f32.mrb[0].mxu0
    %v458 = vadd.f32 %v355, %v457
    %v459 = vpop.f32.mrb[0].mxu0
    %460 = vdwg.mxu0
    %v461 = vlaneseq
    %v462 = vshrl.u32 %v461, 7
    %v463 = vsub.s32 4, %v462
    %v464 = vrot.slane %v30, %v463
    %465 = vmatprep.subr.mxu0 0.0
    %466 = vmatpush1.msra.mxu0 %v36
    %467 = vmatprep.subr.mxu0 0.0
    %468 = vmatpush1.msra.mxu0 0.0
    %469 = vmatprep.subr.mxu0 0.0
    %470 = vmatpush1.msra.mxu0 0.0
    %471 = vmatprep.subr.mxu0 0.0
    %472 = vmatpush1.msra.mxu0 0.0
    %473 = vmatprep.subr.mxu0 0.0
    %474 = vmatpush1.msra.mxu0 0.0
    %475 = vmatprep.subr.mxu0 0.0
    %476 = vmatpush1.msra.mxu0 0.0
    %477 = vmatprep.subr.mxu0 0.0
    %478 = vmatpush1.msra.mxu0 0.0
    %479 = vmatprep.subr.mxu0 0.0
    %480 = vmatpush1.msra.mxu0 0.0
    %481 = vmatprep.subr.mxu0 0.0
    %482 = vmatpush1.msra.mxu0 0.0
    %483 = vmatprep.subr.mxu0 0.0
    %484 = vmatpush1.msra.mxu0 0.0
    %485 = vmatprep.subr.mxu0 0.0
    %486 = vmatpush1.msra.mxu0 0.0
    %487 = vmatprep.subr.mxu0 0.0
    %488 = vmatpush1.msra.mxu0 0.0
    %489 = vmatprep.subr.mxu0 0.0
    %490 = vmatpush1.msra.mxu0 0.0
    %491 = vmatprep.subr.mxu0 0.0
    %492 = vmatpush1.msra.mxu0 0.0
    %493 = vmatprep.subr.mxu0 0.0
    %494 = vmatpush1.msra.mxu0 0.0
    %495 = vmatprep.subr.mxu0 0.0
    %496 = vmatpush1.msra.mxu0 0.0
    %497 = vmatprep.subr.mxu0 0.0
    %498 = vmatpush1.msra.mxu0 0.0
    %499 = vmatprep.subr.mxu0 0.0
    %500 = vmatpush1.msra.mxu0 0.0
    %501 = vmatprep.subr.mxu0 0.0
    %502 = vmatpush1.msra.mxu0 0.0
    %503 = vmatprep.subr.mxu0 0.0
    %504 = vmatpush1.msra.mxu0 0.0
    %505 = vmatprep.subr.mxu0 0.0
    %506 = vmatpush1.msra.mxu0 0.0
    %507 = vmatprep.subr.mxu0 0.0
    %508 = vmatpush1.msra.mxu0 0.0
    %509 = vmatprep.subr.mxu0 0.0
    %510 = vmatpush1.msra.mxu0 0.0
    %511 = vmatprep.subr.mxu0 0.0
    %512 = vmatpush1.msra.mxu0 0.0
    %513 = vmatprep.subr.mxu0 0.0
    %514 = vmatpush1.msra.mxu0 0.0
    %515 = vmatprep.subr.mxu0 0.0
    %516 = vmatpush1.msra.mxu0 0.0
    %517 = vmatprep.subr.mxu0 0.0
    %518 = vmatpush1.msra.mxu0 0.0
    %519 = vmatprep.subr.mxu0 0.0
    %520 = vmatpush1.msra.mxu0 0.0
    %521 = vmatprep.subr.mxu0 0.0
    %522 = vmatpush1.msra.mxu0 0.0
    %523 = vmatprep.subr.mxu0 0.0
    %524 = vmatpush1.msra.mxu0 0.0
    %525 = vmatprep.subr.mxu0 0.0
    %526 = vmatpush1.msra.mxu0 0.0
    %527 = vmatprep.subr.mxu0 0.0
    %528 = vmatpush1.msra.mxu0 0.0
    %529 = vmatprep.mubr.f32.mxu0 0.0
    %530 = vmatmul.mubr.f32.gmra.mrb[0].mxu0 %v216
    %v531 = vpop.f32.mrb[0].mxu0
    %v532 = vadd.f32 %v464, %v531
    %v533 = vpop.f32.mrb[0].mxu0
    %534 = vmatprep.mubr.f32.mxu0 0.0
    %535 = vmatmul.mubr.f32.gmra.mrb[0].mxu0 %v219
    %v536 = vpop.f32.mrb[0].mxu0
    %v537 = vadd.f32 %v464, %v536
    %v538 = vpop.f32.mrb[0].mxu0
    %539 = vmatprep.mubr.f32.mxu0 0.0
    %540 = vmatmul.mubr.f32.gmra.mrb[0].mxu0 %v222
    %v541 = vpop.f32.mrb[0].mxu0
    %v542 = vadd.f32 %v464, %v541
    %v543 = vpop.f32.mrb[0].mxu0
    %544 = vmatprep.mubr.f32.mxu0 0.0
    %545 = vmatmul.mubr.f32.gmra.mrb[0].mxu0 %v225
    %v546 = vpop.f32.mrb[0].mxu0
    %v547 = vadd.f32 %v464, %v546
    %v548 = vpop.f32.mrb[0].mxu0
    %549 = vmatprep.mubr.f32.mxu0 0.0
    %550 = vmatmul.mubr.f32.gmra.mrb[0].mxu0 %v228
    %v551 = vpop.f32.mrb[0].mxu0
    %v552 = vadd.f32 %v464, %v551
    %v553 = vpop.f32.mrb[0].mxu0
    %554 = vmatprep.mubr.f32.mxu0 0.0
    %555 = vmatmul.mubr.f32.gmra.mrb[0].mxu0 %v231
    %v556 = vpop.f32.mrb[0].mxu0
    %v557 = vadd.f32 %v464, %v556
    %v558 = vpop.f32.mrb[0].mxu0
    %559 = vmatprep.mubr.f32.mxu0 0.0
    %560 = vmatmul.mubr.f32.gmra.mrb[0].mxu0 %v234
    %v561 = vpop.f32.mrb[0].mxu0
    %v562 = vadd.f32 %v464, %v561
    %v563 = vpop.f32.mrb[0].mxu0
    %564 = vmatprep.mubr.f32.mxu0 0.0
    %565 = vmatmul.mubr.f32.gmra.mrb[0].mxu0 %v237
    %v566 = vpop.f32.mrb[0].mxu0
    %v567 = vadd.f32 %v464, %v566
    %v568 = vpop.f32.mrb[0].mxu0
    %569 = vdwg.mxu0
    %v571 = vsel %vm81, %v344, 0
    %v574 = vsel %vm81, %v345, 0
    %v577 = vsel %vm81, %v346, 0
    %v580 = vsel %vm81, %v347, 0
    %v583 = vsel %vm81, %v423, 0
    %v586 = vsel %vm81, %v428, 0
    %v589 = vsel %vm81, %v433, 0
    %v592 = vsel %vm81, %v438, 0
    %594 = vmatprep.subr.mxu0 0.0
    %595 = vmatpush1.xpose.msra.mxu0 %v583
    %596 = vmatprep.subr.mxu0 0.0
    %597 = vmatpush1.xpose.msra.mxu0 %v586
    %598 = vmatprep.subr.mxu0 0.0
    %599 = vmatpush1.xpose.msra.mxu0 %v589
    %600 = vmatprep.subr.mxu0 0.0
    %601 = vmatpush1.xpose.msra.mxu0 %v592
    %602 = vmatprep.subr.mxu0 0.0
    %603 = vmatpush1.xpose.msra.mxu0 0.0
    %604 = vmatprep.subr.mxu0 0.0
    %605 = vmatpush1.xpose.msra.mxu0 0.0
    %606 = vmatprep.subr.mxu0 0.0
    %607 = vmatpush1.xpose.msra.mxu0 0.0
    %608 = vmatprep.subr.mxu0 0.0
    %609 = vmatpush1.xpose.msra.mxu0 0.0
    %610 = vmatprep.subr.mxu0 0.0
    %611 = vmatpush1.xpose.msra.mxu0 0.0
    %612 = vmatprep.subr.mxu0 0.0
    %613 = vmatpush1.xpose.msra.mxu0 0.0
    %614 = vmatprep.subr.mxu0 0.0
    %615 = vmatpush1.xpose.msra.mxu0 0.0
    %616 = vmatprep.subr.mxu0 0.0
    %617 = vmatpush1.xpose.msra.mxu0 0.0
    %618 = vmatprep.subr.mxu0 0.0
    %619 = vmatpush1.xpose.msra.mxu0 0.0
    %620 = vmatprep.subr.mxu0 0.0
    %621 = vmatpush1.xpose.msra.mxu0 0.0
    %622 = vmatprep.subr.mxu0 0.0
    %623 = vmatpush1.xpose.msra.mxu0 0.0
    %624 = vmatprep.subr.mxu0 0.0
    %625 = vmatpush1.xpose.msra.mxu0 0.0
    %626 = vmatprep.subr.mxu0 0.0
    %627 = vmatpush1.xpose.msra.mxu0 0.0
    %628 = vmatprep.subr.mxu0 0.0
    %629 = vmatpush1.xpose.msra.mxu0 0.0
    %630 = vmatprep.subr.mxu0 0.0
    %631 = vmatpush1.xpose.msra.mxu0 0.0
    %632 = vmatprep.subr.mxu0 0.0
    %633 = vmatpush1.xpose.msra.mxu0 0.0
    %634 = vmatprep.subr.mxu0 0.0
    %635 = vmatpush1.xpose.msra.mxu0 0.0
    %636 = vmatprep.subr.mxu0 0.0
    %637 = vmatpush1.xpose.msra.mxu0 0.0
    %638 = vmatprep.subr.mxu0 0.0
    %639 = vmatpush1.xpose.msra.mxu0 0.0
    %640 = vmatprep.subr.mxu0 0.0
    %641 = vmatpush1.xpose.msra.mxu0 0.0
    %642 = vmatprep.subr.mxu0 0.0
    %643 = vmatpush1.xpose.msra.mxu0 0.0
    %644 = vmatprep.subr.mxu0 0.0
    %645 = vmatpush1.xpose.msra.mxu0 0.0
    %646 = vmatprep.subr.mxu0 0.0
    %647 = vmatpush1.xpose.msra.mxu0 0.0
    %648 = vmatprep.subr.mxu0 0.0
    %649 = vmatpush1.xpose.msra.mxu0 0.0
    %650 = vmatprep.subr.mxu0 0.0
    %651 = vmatpush1.xpose.msra.mxu0 0.0
    %652 = vmatprep.subr.mxu0 0.0
    %653 = vmatpush1.xpose.msra.mxu0 0.0
    %654 = vmatprep.subr.mxu0 0.0
    %655 = vmatpush1.xpose.msra.mxu0 0.0
    %656 = vmatprep.subr.mxu0 0.0
    %657 = vmatpush1.xpose.msra.mxu0 0.0
    %658 = vmatprep.mubr.f32.mxu0 0.0
    %659 = vmatmul.mubr.f32.gmra.mrb[0].mxu0 %v571
    %v660 = vpop.f32.mrb[0].mxu0
    %v661 = vadd.f32 0.0, %v660
    %v662 = vpop.f32.mrb[0].mxu0
    %663 = vmatprep.mubr.f32.mxu0 0.0
    %664 = vmatmul.mubr.f32.gmra.mrb[0].mxu0 %v574
    %v665 = vpop.f32.mrb[0].mxu0
    %v666 = vadd.f32 0.0, %v665
    %v667 = vpop.f32.mrb[0].mxu0
    %668 = vmatprep.mubr.f32.mxu0 0.0
    %669 = vmatmul.mubr.f32.gmra.mrb[0].mxu0 %v577
    %v670 = vpop.f32.mrb[0].mxu0
    %v671 = vadd.f32 0.0, %v670
    %v672 = vpop.f32.mrb[0].mxu0
    %673 = vmatprep.mubr.f32.mxu0 0.0
    %674 = vmatmul.mubr.f32.gmra.mrb[0].mxu0 %v580
    %v675 = vpop.f32.mrb[0].mxu0
    %v676 = vadd.f32 0.0, %v675
    %v677 = vpop.f32.mrb[0].mxu0
    %678 = vdwg.mxu0
    %v680 = vsel %vm81, %v348, 0
    %v683 = vsel %vm81, %v349, 0
    %v686 = vsel %vm81, %v350, 0
    %v689 = vsel %vm81, %v351, 0
    %v692 = vsel %vm81, %v443, 0
    %v695 = vsel %vm81, %v448, 0
    %v698 = vsel %vm81, %v453, 0
    %v701 = vsel %vm81, %v458, 0
    %703 = vmatprep.subr.mxu0 0.0
    %704 = vmatpush1.xpose.msra.mxu0 %v692
    %705 = vmatprep.subr.mxu0 0.0
    %706 = vmatpush1.xpose.msra.mxu0 %v695
    %707 = vmatprep.subr.mxu0 0.0
    %708 = vmatpush1.xpose.msra.mxu0 %v698
    %709 = vmatprep.subr.mxu0 0.0
    %710 = vmatpush1.xpose.msra.mxu0 %v701
    %711 = vmatprep.subr.mxu0 0.0
    %712 = vmatpush1.xpose.msra.mxu0 0.0
    %713 = vmatprep.subr.mxu0 0.0
    %714 = vmatpush1.xpose.msra.mxu0 0.0
    %715 = vmatprep.subr.mxu0 0.0
    %716 = vmatpush1.xpose.msra.mxu0 0.0
    %717 = vmatprep.subr.mxu0 0.0
    %718 = vmatpush1.xpose.msra.mxu0 0.0
    %719 = vmatprep.subr.mxu0 0.0
    %720 = vmatpush1.xpose.msra.mxu0 0.0
    %721 = vmatprep.subr.mxu0 0.0
    %722 = vmatpush1.xpose.msra.mxu0 0.0
    %723 = vmatprep.subr.mxu0 0.0
    %724 = vmatpush1.xpose.msra.mxu0 0.0
    %725 = vmatprep.subr.mxu0 0.0
    %726 = vmatpush1.xpose.msra.mxu0 0.0
    %727 = vmatprep.subr.mxu0 0.0
    %728 = vmatpush1.xpose.msra.mxu0 0.0
    %729 = vmatprep.subr.mxu0 0.0
    %730 = vmatpush1.xpose.msra.mxu0 0.0
    %731 = vmatprep.subr.mxu0 0.0
    %732 = vmatpush1.xpose.msra.mxu0 0.0
    %733 = vmatprep.subr.mxu0 0.0
    %734 = vmatpush1.xpose.msra.mxu0 0.0
    %735 = vmatprep.subr.mxu0 0.0
    %736 = vmatpush1.xpose.msra.mxu0 0.0
    %737 = vmatprep.subr.mxu0 0.0
    %738 = vmatpush1.xpose.msra.mxu0 0.0
    %739 = vmatprep.subr.mxu0 0.0
    %740 = vmatpush1.xpose.msra.mxu0 0.0
    %741 = vmatprep.subr.mxu0 0.0
    %742 = vmatpush1.xpose.msra.mxu0 0.0
    %743 = vmatprep.subr.mxu0 0.0
    %744 = vmatpush1.xpose.msra.mxu0 0.0
    %745 = vmatprep.subr.mxu0 0.0
    %746 = vmatpush1.xpose.msra.mxu0 0.0
    %747 = vmatprep.subr.mxu0 0.0
    %748 = vmatpush1.xpose.msra.mxu0 0.0
    %749 = vmatprep.subr.mxu0 0.0
    %750 = vmatpush1.xpose.msra.mxu0 0.0
    %751 = vmatprep.subr.mxu0 0.0
    %752 = vmatpush1.xpose.msra.mxu0 0.0
    %753 = vmatprep.subr.mxu0 0.0
    %754 = vmatpush1.xpose.msra.mxu0 0.0
    %755 = vmatprep.subr.mxu0 0.0
    %756 = vmatpush1.xpose.msra.mxu0 0.0
    %757 = vmatprep.subr.mxu0 0.0
    %758 = vmatpush1.xpose.msra.mxu0 0.0
    %759 = vmatprep.subr.mxu0 0.0
    %760 = vmatpush1.xpose.msra.mxu0 0.0
    %761 = vmatprep.subr.mxu0 0.0
    %762 = vmatpush1.xpose.msra.mxu0 0.0
    %763 = vmatprep.subr.mxu0 0.0
    %764 = vmatpush1.xpose.msra.mxu0 0.0
    %765 = vmatprep.subr.mxu0 0.0
    %766 = vmatpush1.xpose.msra.mxu0 0.0
    %767 = vmatprep.mubr.f32.mxu0 0.0
    %768 = vmatmul.mubr.f32.gmra.mrb[0].mxu0 %v680
    %v769 = vpop.f32.mrb[0].mxu0
    %v770 = vadd.f32 0.0, %v769
    %v771 = vpop.f32.mrb[0].mxu0
    %772 = vmatprep.mubr.f32.mxu0 0.0
    %773 = vmatmul.mubr.f32.gmra.mrb[0].mxu0 %v683
    %v774 = vpop.f32.mrb[0].mxu0
    %v775 = vadd.f32 0.0, %v774
    %v776 = vpop.f32.mrb[0].mxu0
    %777 = vmatprep.mubr.f32.mxu0 0.0
    %778 = vmatmul.mubr.f32.gmra.mrb[0].mxu0 %v686
    %v779 = vpop.f32.mrb[0].mxu0
    %v780 = vadd.f32 0.0, %v779
    %v781 = vpop.f32.mrb[0].mxu0
    %782 = vmatprep.mubr.f32.mxu0 0.0
    %783 = vmatmul.mubr.f32.gmra.mrb[0].mxu0 %v689
    %v784 = vpop.f32.mrb[0].mxu0
    %v785 = vadd.f32 0.0, %v784
    %v786 = vpop.f32.mrb[0].mxu0
    %787 = vdwg.mxu0
    %v788 = vmul.f32 %v661, 0.17677669
    %v789 = vmul.f32 %v666, 0.17677669
    %v790 = vmul.f32 %v671, 0.17677669
    %v791 = vmul.f32 %v676, 0.17677669
    %v792 = vmul.f32 %v770, 0.17677669
    %v793 = vmul.f32 %v775, 0.17677669
    %v794 = vmul.f32 %v780, 0.17677669
    %v795 = vmul.f32 %v785, 0.17677669
    %vm796 = vcmask 261120
    %v797 = vsel %vm796, %v788, -inf
    %798 = vmax.xlane.f32.xlu0 %v797
    %v799 = vpop.xlane.xlu0 %798
    %v800 = vsel %vm796, %v789, -inf
    %801 = vmax.xlane.f32.xlu0 %v800
    %v802 = vpop.xlane.xlu0 %801
    %v803 = vsel %vm796, %v790, -inf
    %804 = vmax.xlane.f32.xlu0 %v803
    %v805 = vpop.xlane.xlu0 %804
    %v806 = vsel %vm796, %v791, -inf
    %807 = vmax.xlane.f32.xlu0 %v806
    %v808 = vpop.xlane.xlu0 %807
    %v809 = vsel %vm796, %v792, -inf
    %810 = vmax.xlane.f32.xlu0 %v809
    %v811 = vpop.xlane.xlu0 %810
    %v812 = vsel %vm796, %v793, -inf
    %813 = vmax.xlane.f32.xlu0 %v812
    %v814 = vpop.xlane.xlu0 %813
    %v815 = vsel %vm796, %v794, -inf
    %816 = vmax.xlane.f32.xlu0 %v815
    %v817 = vpop.xlane.xlu0 %816
    %v818 = vsel %vm796, %v795, -inf
    %819 = vmax.xlane.f32.xlu0 %v818
    %v820 = vpop.xlane.xlu0 %819
    %v821 = vsub.f32 %v788, %v799
    %v822 = vsub.f32 %v789, %v802
    %v823 = vsub.f32 %v790, %v805
    %v824 = vsub.f32 %v791, %v808
    %v825 = vsub.f32 %v792, %v811
    %v826 = vsub.f32 %v793, %v814
    %v827 = vsub.f32 %v794, %v817
    %v828 = vsub.f32 %v795, %v820
    %v829 = vmul.f32 %v821, 1.442695
    %v830 = vpow.pop %v829
    %v831 = vmul.f32 %v822, 1.442695
    %v832 = vpow.pop %v831
    %v833 = vmul.f32 %v823, 1.442695
    %v834 = vpow.pop %v833
    %v835 = vmul.f32 %v824, 1.442695
    %v836 = vpow.pop %v835
    %v837 = vmul.f32 %v825, 1.442695
    %v838 = vpow.pop %v837
    %v839 = vmul.f32 %v826, 1.442695
    %v840 = vpow.pop %v839
    %v841 = vmul.f32 %v827, 1.442695
    %v842 = vpow.pop %v841
    %v843 = vmul.f32 %v828, 1.442695
    %v844 = vpow.pop %v843
    %v845 = vsel %vm796, %v830, 0.0
    %846 = vadd.xlane.f32.xlu0 %v845
    %v847 = vpop.xlane.xlu0 %846
    %v848 = vsel %vm796, %v832, 0.0
    %849 = vadd.xlane.f32.xlu0 %v848
    %v850 = vpop.xlane.xlu0 %849
    %v851 = vsel %vm796, %v834, 0.0
    %852 = vadd.xlane.f32.xlu0 %v851
    %v853 = vpop.xlane.xlu0 %852
    %v854 = vsel %vm796, %v836, 0.0
    %855 = vadd.xlane.f32.xlu0 %v854
    %v856 = vpop.xlane.xlu0 %855
    %v857 = vsel %vm796, %v838, 0.0
    %858 = vadd.xlane.f32.xlu0 %v857
    %v859 = vpop.xlane.xlu0 %858
    %v860 = vsel %vm796, %v840, 0.0
    %861 = vadd.xlane.f32.xlu0 %v860
    %v862 = vpop.xlane.xlu0 %861
    %v863 = vsel %vm796, %v842, 0.0
    %864 = vadd.xlane.f32.xlu0 %v863
    %v865 = vpop.xlane.xlu0 %864
    %v866 = vsel %vm796, %v844, 0.0
    %867 = vadd.xlane.f32.xlu0 %v866
    %v868 = vpop.xlane.xlu0 %867
    %v869 = vrcp.pop %v847
    %v870 = vrcp.pop %v850
    %v871 = vrcp.pop %v853
    %v872 = vrcp.pop %v856
    %v873 = vrcp.pop %v859
    %v874 = vrcp.pop %v862
    %v875 = vrcp.pop %v865
    %v876 = vrcp.pop %v868
    %v877 = vmul.f32 %v830, %v869
    %v878 = vmul.f32 %v832, %v870
    %v879 = vmul.f32 %v834, %v871
    %v880 = vmul.f32 %v836, %v872
    %v881 = vmul.f32 %v838, %v873
    %v882 = vmul.f32 %v840, %v874
    %v883 = vmul.f32 %v842, %v875
    %v884 = vmul.f32 %v844, %v876
    %v886 = vsel %vm796, %v877, 0
    %v889 = vsel %vm796, %v878, 0
    %v892 = vsel %vm796, %v879, 0
    %v895 = vsel %vm796, %v880, 0
    %897 = vmatprep.subr.mxu0 0.0
    %898 = vmatpush1.msra.mxu0 %v532
    %899 = vmatprep.subr.mxu0 0.0
    %900 = vmatpush1.msra.mxu0 %v537
    %901 = vmatprep.subr.mxu0 0.0
    %902 = vmatpush1.msra.mxu0 %v542
    %903 = vmatprep.subr.mxu0 0.0
    %904 = vmatpush1.msra.mxu0 %v547
    %905 = vmatprep.subr.mxu0 0.0
    %906 = vmatpush1.msra.mxu0 0.0
    %907 = vmatprep.subr.mxu0 0.0
    %908 = vmatpush1.msra.mxu0 0.0
    %909 = vmatprep.subr.mxu0 0.0
    %910 = vmatpush1.msra.mxu0 0.0
    %911 = vmatprep.subr.mxu0 0.0
    %912 = vmatpush1.msra.mxu0 0.0
    %913 = vmatprep.subr.mxu0 0.0
    %914 = vmatpush1.msra.mxu0 0.0
    %915 = vmatprep.subr.mxu0 0.0
    %916 = vmatpush1.msra.mxu0 0.0
    %917 = vmatprep.subr.mxu0 0.0
    %918 = vmatpush1.msra.mxu0 0.0
    %919 = vmatprep.subr.mxu0 0.0
    %920 = vmatpush1.msra.mxu0 0.0
    %921 = vmatprep.subr.mxu0 0.0
    %922 = vmatpush1.msra.mxu0 0.0
    %923 = vmatprep.subr.mxu0 0.0
    %924 = vmatpush1.msra.mxu0 0.0
    %925 = vmatprep.subr.mxu0 0.0
    %926 = vmatpush1.msra.mxu0 0.0
    %927 = vmatprep.subr.mxu0 0.0
    %928 = vmatpush1.msra.mxu0 0.0
    %929 = vmatprep.subr.mxu0 0.0
    %930 = vmatpush1.msra.mxu0 0.0
    %931 = vmatprep.subr.mxu0 0.0
    %932 = vmatpush1.msra.mxu0 0.0
    %933 = vmatprep.subr.mxu0 0.0
    %934 = vmatpush1.msra.mxu0 0.0
    %935 = vmatprep.subr.mxu0 0.0
    %936 = vmatpush1.msra.mxu0 0.0
    %937 = vmatprep.subr.mxu0 0.0
    %938 = vmatpush1.msra.mxu0 0.0
    %939 = vmatprep.subr.mxu0 0.0
    %940 = vmatpush1.msra.mxu0 0.0
    %941 = vmatprep.subr.mxu0 0.0
    %942 = vmatpush1.msra.mxu0 0.0
    %943 = vmatprep.subr.mxu0 0.0
    %944 = vmatpush1.msra.mxu0 0.0
    %945 = vmatprep.subr.mxu0 0.0
    %946 = vmatpush1.msra.mxu0 0.0
    %947 = vmatprep.subr.mxu0 0.0
    %948 = vmatpush1.msra.mxu0 0.0
    %949 = vmatprep.subr.mxu0 0.0
    %950 = vmatpush1.msra.mxu0 0.0
    %951 = vmatprep.subr.mxu0 0.0
    %952 = vmatpush1.msra.mxu0 0.0
    %953 = vmatprep.subr.mxu0 0.0
    %954 = vmatpush1.msra.mxu0 0.0
    %955 = vmatprep.subr.mxu0 0.0
    %956 = vmatpush1.msra.mxu0 0.0
    %957 = vmatprep.subr.mxu0 0.0
    %958 = vmatpush1.msra.mxu0 0.0
    %959 = vmatprep.subr.mxu0 0.0
    %960 = vmatpush1.msra.mxu0 0.0
    %961 = vmatprep.mubr.f32.mxu0 0.0
    %962 = vmatmul.mubr.f32.gmra.mrb[0].mxu0 %v886
    %v963 = vpop.f32.mrb[0].mxu0
    %v964 = vadd.f32 0.0, %v963
    %v965 = vpop.f32.mrb[0].mxu0
    %966 = vmatprep.mubr.f32.mxu0 0.0
    %967 = vmatmul.mubr.f32.gmra.mrb[0].mxu0 %v889
    %v968 = vpop.f32.mrb[0].mxu0
    %v969 = vadd.f32 0.0, %v968
    %v970 = vpop.f32.mrb[0].mxu0
    %971 = vmatprep.mubr.f32.mxu0 0.0
    %972 = vmatmul.mubr.f32.gmra.mrb[0].mxu0 %v892
    %v973 = vpop.f32.mrb[0].mxu0
    %v974 = vadd.f32 0.0, %v973
    %v975 = vpop.f32.mrb[0].mxu0
    %976 = vmatprep.mubr.f32.mxu0 0.0
    %977 = vmatmul.mubr.f32.gmra.mrb[0].mxu0 %v895
    %v978 = vpop.f32.mrb[0].mxu0
    %v979 = vadd.f32 0.0, %v978
    %v980 = vpop.f32.mrb[0].mxu0
    %981 = vdwg.mxu0
    %v983 = vsel %vm796, %v881, 0
    %v986 = vsel %vm796, %v882, 0
    %v989 = vsel %vm796, %v883, 0
    %v992 = vsel %vm796, %v884, 0
    %994 = vmatprep.subr.mxu0 0.0
    %995 = vmatpush1.msra.mxu0 %v552
    %996 = vmatprep.subr.mxu0 0.0
    %997 = vmatpush1.msra.mxu0 %v557
    %998 = vmatprep.subr.mxu0 0.0
    %999 = vmatpush1.msra.mxu0 %v562
    %1000 = vmatprep.subr.mxu0 0.0
    %1001 = vmatpush1.msra.mxu0 %v567
    %1002 = vmatprep.subr.mxu0 0.0
    %1003 = vmatpush1.msra.mxu0 0.0
    %1004 = vmatprep.subr.mxu0 0.0
    %1005 = vmatpush1.msra.mxu0 0.0
    %1006 = vmatprep.subr.mxu0 0.0
    %1007 = vmatpush1.msra.mxu0 0.0
    %1008 = vmatprep.subr.mxu0 0.0
    %1009 = vmatpush1.msra.mxu0 0.0
    %1010 = vmatprep.subr.mxu0 0.0
    %1011 = vmatpush1.msra.mxu0 0.0
    %1012 = vmatprep.subr.mxu0 0.0
    %1013 = vmatpush1.msra.mxu0 0.0
    %1014 = vmatprep.subr.mxu0 0.0
    %1015 = vmatpush1.msra.mxu0 0.0
    %1016 = vmatprep.subr.mxu0 0.0
    %1017 = vmatpush1.msra.mxu0 0.0
    %1018 = vmatprep.subr.mxu0 0.0
    %1019 = vmatpush1.msra.mxu0 0.0
    %1020 = vmatprep.subr.mxu0 0.0
    %1021 = vmatpush1.msra.mxu0 0.0
    %1022 = vmatprep.subr.mxu0 0.0
    %1023 = vmatpush1.msra.mxu0 0.0
    %1024 = vmatprep.subr.mxu0 0.0
    %1025 = vmatpush1.msra.mxu0 0.0
    %1026 = vmatprep.subr.mxu0 0.0
    %1027 = vmatpush1.msra.mxu0 0.0
    %1028 = vmatprep.subr.mxu0 0.0
    %1029 = vmatpush1.msra.mxu0 0.0
    %1030 = vmatprep.subr.mxu0 0.0
    %1031 = vmatpush1.msra.mxu0 0.0
    %1032 = vmatprep.subr.mxu0 0.0
    %1033 = vmatpush1.msra.mxu0 0.0
    %1034 = vmatprep.subr.mxu0 0.0
    %1035 = vmatpush1.msra.mxu0 0.0
    %1036 = vmatprep.subr.mxu0 0.0
    %1037 = vmatpush1.msra.mxu0 0.0
    %1038 = vmatprep.subr.mxu0 0.0
    %1039 = vmatpush1.msra.mxu0 0.0
    %1040 = vmatprep.subr.mxu0 0.0
    %1041 = vmatpush1.msra.mxu0 0.0
    %1042 = vmatprep.subr.mxu0 0.0
    %1043 = vmatpush1.msra.mxu0 0.0
    %1044 = vmatprep.subr.mxu0 0.0
    %1045 = vmatpush1.msra.mxu0 0.0
    %1046 = vmatprep.subr.mxu0 0.0
    %1047 = vmatpush1.msra.mxu0 0.0
    %1048 = vmatprep.subr.mxu0 0.0
    %1049 = vmatpush1.msra.mxu0 0.0
    %1050 = vmatprep.subr.mxu0 0.0
    %1051 = vmatpush1.msra.mxu0 0.0
    %1052 = vmatprep.subr.mxu0 0.0
    %1053 = vmatpush1.msra.mxu0 0.0
    %1054 = vmatprep.subr.mxu0 0.0
    %1055 = vmatpush1.msra.mxu0 0.0
    %1056 = vmatprep.subr.mxu0 0.0
    %1057 = vmatpush1.msra.mxu0 0.0
    %1058 = vmatprep.mubr.f32.mxu0 0.0
    %1059 = vmatmul.mubr.f32.gmra.mrb[0].mxu0 %v983
    %v1060 = vpop.f32.mrb[0].mxu0
    %v1061 = vadd.f32 0.0, %v1060
    %v1062 = vpop.f32.mrb[0].mxu0
    %1063 = vmatprep.mubr.f32.mxu0 0.0
    %1064 = vmatmul.mubr.f32.gmra.mrb[0].mxu0 %v986
    %v1065 = vpop.f32.mrb[0].mxu0
    %v1066 = vadd.f32 0.0, %v1065
    %v1067 = vpop.f32.mrb[0].mxu0
    %1068 = vmatprep.mubr.f32.mxu0 0.0
    %1069 = vmatmul.mubr.f32.gmra.mrb[0].mxu0 %v989
    %v1070 = vpop.f32.mrb[0].mxu0
    %v1071 = vadd.f32 0.0, %v1070
    %v1072 = vpop.f32.mrb[0].mxu0
    %1073 = vmatprep.mubr.f32.mxu0 0.0
    %1074 = vmatmul.mubr.f32.gmra.mrb[0].mxu0 %v992
    %v1075 = vpop.f32.mrb[0].mxu0
    %v1076 = vadd.f32 0.0, %v1075
    %v1077 = vpop.f32.mrb[0].mxu0
    %1078 = vdwg.mxu0
    %v1079 = vlaneseq
    %v1080 = vshrl.u32 %v1079, 7
    %v1081 = vsub.s32 5, %v1080
    %v1082 = vrot.slane %v30, %v1081
    %v1084 = vsel %vm81, %v964, 0
    %v1087 = vsel %vm81, %v969, 0
    %v1090 = vsel %vm81, %v974, 0
    %v1093 = vsel %vm81, %v979, 0
    %v1096 = vsel %vm81, %v1061, 0
    %v1099 = vsel %vm81, %v1066, 0
    %v1102 = vsel %vm81, %v1071, 0
    %v1105 = vsel %vm81, %v1076, 0
    %1107 = vmatprep.subr.mxu0 0.0
    %1108 = vmatpush1.msra.mxu0 %v38
    %1109 = vmatprep.subr.mxu0 0.0
    %1110 = vmatpush1.msra.mxu0 0.0
    %1111 = vmatprep.subr.mxu0 0.0
    %1112 = vmatpush1.msra.mxu0 0.0
    %1113 = vmatprep.subr.mxu0 0.0
    %1114 = vmatpush1.msra.mxu0 0.0
    %1115 = vmatprep.subr.mxu0 0.0
    %1116 = vmatpush1.msra.mxu0 0.0
    %1117 = vmatprep.subr.mxu0 0.0
    %1118 = vmatpush1.msra.mxu0 0.0
    %1119 = vmatprep.subr.mxu0 0.0
    %1120 = vmatpush1.msra.mxu0 0.0
    %1121 = vmatprep.subr.mxu0 0.0
    %1122 = vmatpush1.msra.mxu0 0.0
    %1123 = vmatprep.subr.mxu0 0.0
    %1124 = vmatpush1.msra.mxu0 0.0
    %1125 = vmatprep.subr.mxu0 0.0
    %1126 = vmatpush1.msra.mxu0 0.0
    %1127 = vmatprep.subr.mxu0 0.0
    %1128 = vmatpush1.msra.mxu0 0.0
    %1129 = vmatprep.subr.mxu0 0.0
    %1130 = vmatpush1.msra.mxu0 0.0
    %1131 = vmatprep.subr.mxu0 0.0
    %1132 = vmatpush1.msra.mxu0 0.0
    %1133 = vmatprep.subr.mxu0 0.0
    %1134 = vmatpush1.msra.mxu0 0.0
    %1135 = vmatprep.subr.mxu0 0.0
    %1136 = vmatpush1.msra.mxu0 0.0
    %1137 = vmatprep.subr.mxu0 0.0
    %1138 = vmatpush1.msra.mxu0 0.0
    %1139 = vmatprep.subr.mxu0 0.0
    %1140 = vmatpush1.msra.mxu0 0.0
    %1141 = vmatprep.subr.mxu0 0.0
    %1142 = vmatpush1.msra.mxu0 0.0
    %1143 = vmatprep.subr.mxu0 0.0
    %1144 = vmatpush1.msra.mxu0 0.0
    %1145 = vmatprep.subr.mxu0 0.0
    %1146 = vmatpush1.msra.mxu0 0.0
    %1147 = vmatprep.subr.mxu0 0.0
    %1148 = vmatpush1.msra.mxu0 0.0
    %1149 = vmatprep.subr.mxu0 0.0
    %1150 = vmatpush1.msra.mxu0 0.0
    %1151 = vmatprep.subr.mxu0 0.0
    %1152 = vmatpush1.msra.mxu0 0.0
    %1153 = vmatprep.subr.mxu0 0.0
    %1154 = vmatpush1.msra.mxu0 0.0
    %1155 = vmatprep.subr.mxu0 0.0
    %1156 = vmatpush1.msra.mxu0 0.0
    %1157 = vmatprep.subr.mxu0 0.0
    %1158 = vmatpush1.msra.mxu0 0.0
    %1159 = vmatprep.subr.mxu0 0.0
    %1160 = vmatpush1.msra.mxu0 0.0
    %1161 = vmatprep.subr.mxu0 0.0
    %1162 = vmatpush1.msra.mxu0 0.0
    %1163 = vmatprep.subr.mxu0 0.0
    %1164 = vmatpush1.msra.mxu0 0.0
    %1165 = vmatprep.subr.mxu0 0.0
    %1166 = vmatpush1.msra.mxu0 0.0
    %1167 = vmatprep.subr.mxu0 0.0
    %1168 = vmatpush1.msra.mxu0 0.0
    %1169 = vmatprep.subr.mxu0 0.0
    %1170 = vmatpush1.msra.mxu0 0.0
    %1171 = vmatprep.mubr.f32.mxu0 0.0
    %1172 = vmatmul.mubr.f32.gmra.mrb[0].mxu0 %v1084
    %v1173 = vpop.f32.mrb[0].mxu0
    %v1174 = vadd.f32 %v1082, %v1173
    %v1175 = vpop.f32.mrb[0].mxu0
    %1176 = vmatprep.mubr.f32.mxu0 0.0
    %1177 = vmatmul.mubr.f32.gmra.mrb[0].mxu0 %v1087
    %v1178 = vpop.f32.mrb[0].mxu0
    %v1179 = vadd.f32 %v1082, %v1178
    %v1180 = vpop.f32.mrb[0].mxu0
    %1181 = vmatprep.mubr.f32.mxu0 0.0
    %1182 = vmatmul.mubr.f32.gmra.mrb[0].mxu0 %v1090
    %v1183 = vpop.f32.mrb[0].mxu0
    %v1184 = vadd.f32 %v1082, %v1183
    %v1185 = vpop.f32.mrb[0].mxu0
    %1186 = vmatprep.mubr.f32.mxu0 0.0
    %1187 = vmatmul.mubr.f32.gmra.mrb[0].mxu0 %v1093
    %v1188 = vpop.f32.mrb[0].mxu0
    %v1189 = vadd.f32 %v1082, %v1188
    %v1190 = vpop.f32.mrb[0].mxu0
    %1191 = vmatprep.mubr.f32.mxu0 0.0
    %1192 = vmatmul.mubr.f32.gmra.mrb[0].mxu0 %v1096
    %v1193 = vpop.f32.mrb[0].mxu0
    %v1194 = vadd.f32 %v1082, %v1193
    %v1195 = vpop.f32.mrb[0].mxu0
    %1196 = vmatprep.mubr.f32.mxu0 0.0
    %1197 = vmatmul.mubr.f32.gmra.mrb[0].mxu0 %v1099
    %v1198 = vpop.f32.mrb[0].mxu0
    %v1199 = vadd.f32 %v1082, %v1198
    %v1200 = vpop.f32.mrb[0].mxu0
    %1201 = vmatprep.mubr.f32.mxu0 0.0
    %1202 = vmatmul.mubr.f32.gmra.mrb[0].mxu0 %v1102
    %v1203 = vpop.f32.mrb[0].mxu0
    %v1204 = vadd.f32 %v1082, %v1203
    %v1205 = vpop.f32.mrb[0].mxu0
    %1206 = vmatprep.mubr.f32.mxu0 0.0
    %1207 = vmatmul.mubr.f32.gmra.mrb[0].mxu0 %v1105
    %v1208 = vpop.f32.mrb[0].mxu0
    %v1209 = vadd.f32 %v1082, %v1208
    %v1210 = vpop.f32.mrb[0].mxu0
    %1211 = vdwg.mxu0
    %v1212 = vadd.f32 %v73, %v1174
    %v1213 = vadd.f32 %v74, %v1179
    %v1214 = vadd.f32 %v75, %v1184
    %v1215 = vadd.f32 %v76, %v1189
    %v1216 = vadd.f32 %v77, %v1194
    %v1217 = vadd.f32 %v78, %v1199
    %v1218 = vadd.f32 %v79, %v1204
    %v1219 = vadd.f32 %v80, %v1209
    %v1220 = vsel %vm81, %v1212, 0.0
    %1221 = vadd.xlane.f32.xlu0 %v1220
    %v1222 = vpop.xlane.xlu0 %1221
    %v1223 = vsel %vm81, %v1213, 0.0
    %1224 = vadd.xlane.f32.xlu0 %v1223
    %v1225 = vpop.xlane.xlu0 %1224
    %v1226 = vsel %vm81, %v1214, 0.0
    %1227 = vadd.xlane.f32.xlu0 %v1226
    %v1228 = vpop.xlane.xlu0 %1227
    %v1229 = vsel %vm81, %v1215, 0.0
    %1230 = vadd.xlane.f32.xlu0 %v1229
    %v1231 = vpop.xlane.xlu0 %1230
    %v1232 = vsel %vm81, %v1216, 0.0
    %1233 = vadd.xlane.f32.xlu0 %v1232
    %v1234 = vpop.xlane.xlu0 %1233
    %v1235 = vsel %vm81, %v1217, 0.0
    %1236 = vadd.xlane.f32.xlu0 %v1235
    %v1237 = vpop.xlane.xlu0 %1236
    %v1238 = vsel %vm81, %v1218, 0.0
    %1239 = vadd.xlane.f32.xlu0 %v1238
    %v1240 = vpop.xlane.xlu0 %1239
    %v1241 = vsel %vm81, %v1219, 0.0
    %1242 = vadd.xlane.f32.xlu0 %v1241
    %v1243 = vpop.xlane.xlu0 %1242
    %v1244 = vmul.f32 %v1222, %v106
    %v1245 = vmul.f32 %v1225, %v106
    %v1246 = vmul.f32 %v1228, %v106
    %v1247 = vmul.f32 %v1231, %v106
    %v1248 = vmul.f32 %v1234, %v106
    %v1249 = vmul.f32 %v1237, %v106
    %v1250 = vmul.f32 %v1240, %v106
    %v1251 = vmul.f32 %v1243, %v106
    %v1252 = vsub.f32 %v1212, %v1244
    %v1253 = vsub.f32 %v1213, %v1245
    %v1254 = vsub.f32 %v1214, %v1246
    %v1255 = vsub.f32 %v1215, %v1247
    %v1256 = vsub.f32 %v1216, %v1248
    %v1257 = vsub.f32 %v1217, %v1249
    %v1258 = vsub.f32 %v1218, %v1250
    %v1259 = vsub.f32 %v1219, %v1251
    %v1260 = vmul.f32 %v1252, %v1252
    %v1261 = vmul.f32 %v1253, %v1253
    %v1262 = vmul.f32 %v1254, %v1254
    %v1263 = vmul.f32 %v1255, %v1255
    %v1264 = vmul.f32 %v1256, %v1256
    %v1265 = vmul.f32 %v1257, %v1257
    %v1266 = vmul.f32 %v1258, %v1258
    %v1267 = vmul.f32 %v1259, %v1259
    %v1268 = vsel %vm81, %v1260, 0.0
    %1269 = vadd.xlane.f32.xlu0 %v1268
    %v1270 = vpop.xlane.xlu0 %1269
    %v1271 = vsel %vm81, %v1261, 0.0
    %1272 = vadd.xlane.f32.xlu0 %v1271
    %v1273 = vpop.xlane.xlu0 %1272
    %v1274 = vsel %vm81, %v1262, 0.0
    %1275 = vadd.xlane.f32.xlu0 %v1274
    %v1276 = vpop.xlane.xlu0 %1275
    %v1277 = vsel %vm81, %v1263, 0.0
    %1278 = vadd.xlane.f32.xlu0 %v1277
    %v1279 = vpop.xlane.xlu0 %1278
    %v1280 = vsel %vm81, %v1264, 0.0
    %1281 = vadd.xlane.f32.xlu0 %v1280
    %v1282 = vpop.xlane.xlu0 %1281
    %v1283 = vsel %vm81, %v1265, 0.0
    %1284 = vadd.xlane.f32.xlu0 %v1283
    %v1285 = vpop.xlane.xlu0 %1284
    %v1286 = vsel %vm81, %v1266, 0.0
    %1287 = vadd.xlane.f32.xlu0 %v1286
    %v1288 = vpop.xlane.xlu0 %1287
    %v1289 = vsel %vm81, %v1267, 0.0
    %1290 = vadd.xlane.f32.xlu0 %v1289
    %v1291 = vpop.xlane.xlu0 %1290
    %v1292 = vmul.f32 %v1270, %v106
    %v1293 = vmul.f32 %v1273, %v106
    %v1294 = vmul.f32 %v1276, %v106
    %v1295 = vmul.f32 %v1279, %v106
    %v1296 = vmul.f32 %v1282, %v106
    %v1297 = vmul.f32 %v1285, %v106
    %v1298 = vmul.f32 %v1288, %v106
    %v1299 = vmul.f32 %v1291, %v106
    %v1300 = vadd.f32 %v1292, 1e-05
    %v1301 = vadd.f32 %v1293, 1e-05
    %v1302 = vadd.f32 %v1294, 1e-05
    %v1303 = vadd.f32 %v1295, 1e-05
    %v1304 = vadd.f32 %v1296, 1e-05
    %v1305 = vadd.f32 %v1297, 1e-05
    %v1306 = vadd.f32 %v1298, 1e-05
    %v1307 = vadd.f32 %v1299, 1e-05
    %v1308 = vrsqrt.pop %v1300
    %v1309 = vrsqrt.pop %v1301
    %v1310 = vrsqrt.pop %v1302
    %v1311 = vrsqrt.pop %v1303
    %v1312 = vrsqrt.pop %v1304
    %v1313 = vrsqrt.pop %v1305
    %v1314 = vrsqrt.pop %v1306
    %v1315 = vrsqrt.pop %v1307
    %v1316 = vmul.f32 %v1252, %v1308
    %v1317 = vmul.f32 %v1253, %v1309
    %v1318 = vmul.f32 %v1254, %v1310
    %v1319 = vmul.f32 %v1255, %v1311
    %v1320 = vmul.f32 %v1256, %v1312
    %v1321 = vmul.f32 %v1257, %v1313
    %v1322 = vmul.f32 %v1258, %v1314
    %v1323 = vmul.f32 %v1259, %v1315
    %v1324 = vlaneseq
    %v1325 = vshrl.u32 %v1324, 7
    %v1326 = vsub.s32 6, %v1325
    %v1327 = vrot.slane %v30, %v1326
    %v1328 = vmul.f32 %v1316, %v1327
    %v1329 = vmul.f32 %v1317, %v1327
    %v1330 = vmul.f32 %v1318, %v1327
    %v1331 = vmul.f32 %v1319, %v1327
    %v1332 = vmul.f32 %v1320, %v1327
    %v1333 = vmul.f32 %v1321, %v1327
    %v1334 = vmul.f32 %v1322, %v1327
    %v1335 = vmul.f32 %v1323, %v1327
    %v1336 = vlaneseq
    %v1337 = vshrl.u32 %v1336, 7
    %v1338 = vsub.s32 7, %v1337
    %v1339 = vrot.slane %v30, %v1338
    %v1340 = vadd.f32 %v1328, %v1339
    %v1341 = vadd.f32 %v1329, %v1339
    %v1342 = vadd.f32 %v1330, %v1339
    %v1343 = vadd.f32 %v1331, %v1339
    %v1344 = vadd.f32 %v1332, %v1339
    %v1345 = vadd.f32 %v1333, %v1339
    %v1346 = vadd.f32 %v1334, %v1339
    %v1347 = vadd.f32 %v1335, %v1339
    %v1348 = vlaneseq
    %v1349 = vshrl.u32 %v1348, 7
    %v1350 = vsub.s32 0, %v1349
    %v1351 = vrot.slane %v31, %v1350
    %v1353 = vsel %vm81, %v1340, 0
    %v1356 = vsel %vm81, %v1341, 0
    %v1359 = vsel %vm81, %v1342, 0
    %v1362 = vsel %vm81, %v1343, 0
    %v1365 = vsel %vm81, %v1344, 0
    %v1368 = vsel %vm81, %v1345, 0
    %v1371 = vsel %vm81, %v1346, 0
    %v1374 = vsel %vm81, %v1347, 0
    %1376 = vmatprep.subr.mxu0 0.0
    %1377 = vmatpush1.msra.mxu0 %v40
    %1378 = vmatprep.subr.mxu0 0.0
    %1379 = vmatpush1.msra.mxu0 0.0
    %1380 = vmatprep.subr.mxu0 0.0
    %1381 = vmatpush1.msra.mxu0 0.0
    %1382 = vmatprep.subr.mxu0 0.0
    %1383 = vmatpush1.msra.mxu0 0.0
    %1384 = vmatprep.subr.mxu0 0.0
    %1385 = vmatpush1.msra.mxu0 0.0
    %1386 = vmatprep.subr.mxu0 0.0
    %1387 = vmatpush1.msra.mxu0 0.0
    %1388 = vmatprep.subr.mxu0 0.0
    %1389 = vmatpush1.msra.mxu0 0.0
    %1390 = vmatprep.subr.mxu0 0.0
    %1391 = vmatpush1.msra.mxu0 0.0
    %1392 = vmatprep.subr.mxu0 0.0
    %1393 = vmatpush1.msra.mxu0 0.0
    %1394 = vmatprep.subr.mxu0 0.0
    %1395 = vmatpush1.msra.mxu0 0.0
    %1396 = vmatprep.subr.mxu0 0.0
    %1397 = vmatpush1.msra.mxu0 0.0
    %1398 = vmatprep.subr.mxu0 0.0
    %1399 = vmatpush1.msra.mxu0 0.0
    %1400 = vmatprep.subr.mxu0 0.0
    %1401 = vmatpush1.msra.mxu0 0.0
    %1402 = vmatprep.subr.mxu0 0.0
    %1403 = vmatpush1.msra.mxu0 0.0
    %1404 = vmatprep.subr.mxu0 0.0
    %1405 = vmatpush1.msra.mxu0 0.0
    %1406 = vmatprep.subr.mxu0 0.0
    %1407 = vmatpush1.msra.mxu0 0.0
    %1408 = vmatprep.subr.mxu0 0.0
    %1409 = vmatpush1.msra.mxu0 0.0
    %1410 = vmatprep.subr.mxu0 0.0
    %1411 = vmatpush1.msra.mxu0 0.0
    %1412 = vmatprep.subr.mxu0 0.0
    %1413 = vmatpush1.msra.mxu0 0.0
    %1414 = vmatprep.subr.mxu0 0.0
    %1415 = vmatpush1.msra.mxu0 0.0
    %1416 = vmatprep.subr.mxu0 0.0
    %1417 = vmatpush1.msra.mxu0 0.0
    %1418 = vmatprep.subr.mxu0 0.0
    %1419 = vmatpush1.msra.mxu0 0.0
    %1420 = vmatprep.subr.mxu0 0.0
    %1421 = vmatpush1.msra.mxu0 0.0
    %1422 = vmatprep.subr.mxu0 0.0
    %1423 = vmatpush1.msra.mxu0 0.0
    %1424 = vmatprep.subr.mxu0 0.0
    %1425 = vmatpush1.msra.mxu0 0.0
    %1426 = vmatprep.subr.mxu0 0.0
    %1427 = vmatpush1.msra.mxu0 0.0
    %1428 = vmatprep.subr.mxu0 0.0
    %1429 = vmatpush1.msra.mxu0 0.0
    %1430 = vmatprep.subr.mxu0 0.0
    %1431 = vmatpush1.msra.mxu0 0.0
    %1432 = vmatprep.subr.mxu0 0.0
    %1433 = vmatpush1.msra.mxu0 0.0
    %1434 = vmatprep.subr.mxu0 0.0
    %1435 = vmatpush1.msra.mxu0 0.0
    %1436 = vmatprep.subr.mxu0 0.0
    %1437 = vmatpush1.msra.mxu0 0.0
    %1438 = vmatprep.subr.mxu0 0.0
    %1439 = vmatpush1.msra.mxu0 0.0
    %1440 = vmatprep.mubr.f32.mxu0 0.0
    %1441 = vmatmul.mubr.f32.gmra.mrb[0].mxu0 %v1353
    %v1442 = vpop.f32.mrb[0].mxu0
    %v1443 = vadd.f32 %v1351, %v1442
    %v1444 = vpop.f32.mrb[0].mxu0
    %1445 = vmatprep.mubr.f32.mxu0 0.0
    %1446 = vmatmul.mubr.f32.gmra.mrb[0].mxu0 %v1356
    %v1447 = vpop.f32.mrb[0].mxu0
    %v1448 = vadd.f32 %v1351, %v1447
    %v1449 = vpop.f32.mrb[0].mxu0
    %1450 = vmatprep.mubr.f32.mxu0 0.0
    %1451 = vmatmul.mubr.f32.gmra.mrb[0].mxu0 %v1359
    %v1452 = vpop.f32.mrb[0].mxu0
    %v1453 = vadd.f32 %v1351, %v1452
    %v1454 = vpop.f32.mrb[0].mxu0
    %1455 = vmatprep.mubr.f32.mxu0 0.0
    %1456 = vmatmul.mubr.f32.gmra.mrb[0].mxu0 %v1362
    %v1457 = vpop.f32.mrb[0].mxu0
    %v1458 = vadd.f32 %v1351, %v1457
    %v1459 = vpop.f32.mrb[0].mxu0
    %1460 = vmatprep.mubr.f32.mxu0 0.0
    %1461 = vmatmul.mubr.f32.gmra.mrb[0].mxu0 %v1365
    %v1462 = vpop.f32.mrb[0].mxu0
    %v1463 = vadd.f32 %v1351, %v1462
    %v1464 = vpop.f32.mrb[0].mxu0
    %1465 = vmatprep.mubr.f32.mxu0 0.0
    %1466 = vmatmul.mubr.f32.gmra.mrb[0].mxu0 %v1368
    %v1467 = vpop.f32.mrb[0].mxu0
    %v1468 = vadd.f32 %v1351, %v1467
    %v1469 = vpop.f32.mrb[0].mxu0
    %1470 = vmatprep.mubr.f32.mxu0 0.0
    %1471 = vmatmul.mubr.f32.gmra.mrb[0].mxu0 %v1371
    %v1472 = vpop.f32.mrb[0].mxu0
    %v1473 = vadd.f32 %v1351, %v1472
    %v1474 = vpop.f32.mrb[0].mxu0
    %1475 = vmatprep.mubr.f32.mxu0 0.0
    %1476 = vmatmul.mubr.f32.gmra.mrb[0].mxu0 %v1374
    %v1477 = vpop.f32.mrb[0].mxu0
    %v1478 = vadd.f32 %v1351, %v1477
    %v1479 = vpop.f32.mrb[0].mxu0
    %1480 = vdwg.mxu0
    %v1481 = vmax.f32 %v1443, 0.0
    %v1482 = vmax.f32 %v1448, 0.0
    %v1483 = vmax.f32 %v1453, 0.0
    %v1484 = vmax.f32 %v1458, 0.0
    %v1485 = vmax.f32 %v1463, 0.0
    %v1486 = vmax.f32 %v1468, 0.0
    %v1487 = vmax.f32 %v1473, 0.0
    %v1488 = vmax.f32 %v1478, 0.0
    %v1489 = vlaneseq
    %v1490 = vshrl.u32 %v1489, 7
    %v1491 = vsub.s32 1, %v1490
    %v1492 = vrot.slane %v31, %v1491
    %v1494 = vsel %vm81, %v1481, 0
    %v1497 = vsel %vm81, %v1482, 0
    %v1500 = vsel %vm81, %v1483, 0
    %v1503 = vsel %vm81, %v1484, 0
    %v1506 = vsel %vm81, %v1485, 0
    %v1509 = vsel %vm81, %v1486, 0
    %v1512 = vsel %vm81, %v1487, 0
    %v1515 = vsel %vm81, %v1488, 0
    %1517 = vmatprep.subr.mxu0 0.0
    %1518 = vmatpush1.msra.mxu0 %v42
    %1519 = vmatprep.subr.mxu0 0.0
    %1520 = vmatpush1.msra.mxu0 0.0
    %1521 = vmatprep.subr.mxu0 0.0
    %1522 = vmatpush1.msra.mxu0 0.0
    %1523 = vmatprep.subr.mxu0 0.0
    %1524 = vmatpush1.msra.mxu0 0.0
    %1525 = vmatprep.subr.mxu0 0.0
    %1526 = vmatpush1.msra.mxu0 0.0
    %1527 = vmatprep.subr.mxu0 0.0
    %1528 = vmatpush1.msra.mxu0 0.0
    %1529 = vmatprep.subr.mxu0 0.0
    %1530 = vmatpush1.msra.mxu0 0.0
    %1531 = vmatprep.subr.mxu0 0.0
    %1532 = vmatpush1.msra.mxu0 0.0
    %1533 = vmatprep.subr.mxu0 0.0
    %1534 = vmatpush1.msra.mxu0 0.0
    %1535 = vmatprep.subr.mxu0 0.0
    %1536 = vmatpush1.msra.mxu0 0.0
    %1537 = vmatprep.subr.mxu0 0.0
    %1538 = vmatpush1.msra.mxu0 0.0
    %1539 = vmatprep.subr.mxu0 0.0
    %1540 = vmatpush1.msra.mxu0 0.0
    %1541 = vmatprep.subr.mxu0 0.0
    %1542 = vmatpush1.msra.mxu0 0.0
    %1543 = vmatprep.subr.mxu0 0.0
    %1544 = vmatpush1.msra.mxu0 0.0
    %1545 = vmatprep.subr.mxu0 0.0
    %1546 = vmatpush1.msra.mxu0 0.0
    %1547 = vmatprep.subr.mxu0 0.0
    %1548 = vmatpush1.msra.mxu0 0.0
    %1549 = vmatprep.subr.mxu0 0.0
    %1550 = vmatpush1.msra.mxu0 0.0
    %1551 = vmatprep.subr.mxu0 0.0
    %1552 = vmatpush1.msra.mxu0 0.0
    %1553 = vmatprep.subr.mxu0 0.0
    %1554 = vmatpush1.msra.mxu0 0.0
    %1555 = vmatprep.subr.mxu0 0.0
    %1556 = vmatpush1.msra.mxu0 0.0
    %1557 = vmatprep.subr.mxu0 0.0
    %1558 = vmatpush1.msra.mxu0 0.0
    %1559 = vmatprep.subr.mxu0 0.0
    %1560 = vmatpush1.msra.mxu0 0.0
    %1561 = vmatprep.subr.mxu0 0.0
    %1562 = vmatpush1.msra.mxu0 0.0
    %1563 = vmatprep.subr.mxu0 0.0
    %1564 = vmatpush1.msra.mxu0 0.0
    %1565 = vmatprep.subr.mxu0 0.0
    %1566 = vmatpush1.msra.mxu0 0.0
    %1567 = vmatprep.subr.mxu0 0.0
    %1568 = vmatpush1.msra.mxu0 0.0
    %1569 = vmatprep.subr.mxu0 0.0
    %1570 = vmatpush1.msra.mxu0 0.0
    %1571 = vmatprep.subr.mxu0 0.0
    %1572 = vmatpush1.msra.mxu0 0.0
    %1573 = vmatprep.subr.mxu0 0.0
    %1574 = vmatpush1.msra.mxu0 0.0
    %1575 = vmatprep.subr.mxu0 0.0
    %1576 = vmatpush1.msra.mxu0 0.0
    %1577 = vmatprep.subr.mxu0 0.0
    %1578 = vmatpush1.msra.mxu0 0.0
    %1579 = vmatprep.subr.mxu0 0.0
    %1580 = vmatpush1.msra.mxu0 0.0
    %1581 = vmatprep.mubr.f32.mxu0 0.0
    %1582 = vmatmul.mubr.f32.gmra.mrb[0].mxu0 %v1494
    %v1583 = vpop.f32.mrb[0].mxu0
    %v1584 = vadd.f32 %v1492, %v1583
    %v1585 = vpop.f32.mrb[0].mxu0
    %1586 = vmatprep.mubr.f32.mxu0 0.0
    %1587 = vmatmul.mubr.f32.gmra.mrb[0].mxu0 %v1497
    %v1588 = vpop.f32.mrb[0].mxu0
    %v1589 = vadd.f32 %v1492, %v1588
    %v1590 = vpop.f32.mrb[0].mxu0
    %1591 = vmatprep.mubr.f32.mxu0 0.0
    %1592 = vmatmul.mubr.f32.gmra.mrb[0].mxu0 %v1500
    %v1593 = vpop.f32.mrb[0].mxu0
    %v1594 = vadd.f32 %v1492, %v1593
    %v1595 = vpop.f32.mrb[0].mxu0
    %1596 = vmatprep.mubr.f32.mxu0 0.0
    %1597 = vmatmul.mubr.f32.gmra.mrb[0].mxu0 %v1503
    %v1598 = vpop.f32.mrb[0].mxu0
    %v1599 = vadd.f32 %v1492, %v1598
    %v1600 = vpop.f32.mrb[0].mxu0
    %1601 = vmatprep.mubr.f32.mxu0 0.0
    %1602 = vmatmul.mubr.f32.gmra.mrb[0].mxu0 %v1506
    %v1603 = vpop.f32.mrb[0].mxu0
    %v1604 = vadd.f32 %v1492, %v1603
    %v1605 = vpop.f32.mrb[0].mxu0
    %1606 = vmatprep.mubr.f32.mxu0 0.0
    %1607 = vmatmul.mubr.f32.gmra.mrb[0].mxu0 %v1509
    %v1608 = vpop.f32.mrb[0].mxu0
    %v1609 = vadd.f32 %v1492, %v1608
    %v1610 = vpop.f32.mrb[0].mxu0
    %1611 = vmatprep.mubr.f32.mxu0 0.0
    %1612 = vmatmul.mubr.f32.gmra.mrb[0].mxu0 %v1512
    %v1613 = vpop.f32.mrb[0].mxu0
    %v1614 = vadd.f32 %v1492, %v1613
    %v1615 = vpop.f32.mrb[0].mxu0
    %1616 = vmatprep.mubr.f32.mxu0 0.0
    %1617 = vmatmul.mubr.f32.gmra.mrb[0].mxu0 %v1515
    %v1618 = vpop.f32.mrb[0].mxu0
    %v1619 = vadd.f32 %v1492, %v1618
    %v1620 = vpop.f32.mrb[0].mxu0
    %1621 = vdwg.mxu0
    %v1622 = vadd.f32 %v1212, %v1584
    %v1623 = vadd.f32 %v1213, %v1589
    %v1624 = vadd.f32 %v1214, %v1594
    %v1625 = vadd.f32 %v1215, %v1599
    %v1626 = vadd.f32 %v1216, %v1604
    %v1627 = vadd.f32 %v1217, %v1609
    %v1628 = vadd.f32 %v1218, %v1614
    %v1629 = vadd.f32 %v1219, %v1619
    %v1630 = vsel %vm81, %v1622, 0.0
    %1631 = vadd.xlane.f32.xlu0 %v1630
    %v1632 = vpop.xlane.xlu0 %1631
    %v1633 = vsel %vm81, %v1623, 0.0
    %1634 = vadd.xlane.f32.xlu0 %v1633
    %v1635 = vpop.xlane.xlu0 %1634
    %v1636 = vsel %vm81, %v1624, 0.0
    %1637 = vadd.xlane.f32.xlu0 %v1636
    %v1638 = vpop.xlane.xlu0 %1637
    %v1639 = vsel %vm81, %v1625, 0.0
    %1640 = vadd.xlane.f32.xlu0 %v1639
    %v1641 = vpop.xlane.xlu0 %1640
    %v1642 = vsel %vm81, %v1626, 0.0
    %1643 = vadd.xlane.f32.xlu0 %v1642
    %v1644 = vpop.xlane.xlu0 %1643
    %v1645 = vsel %vm81, %v1627, 0.0
    %1646 = vadd.xlane.f32.xlu0 %v1645
    %v1647 = vpop.xlane.xlu0 %1646
    %v1648 = vsel %vm81, %v1628, 0.0
    %1649 = vadd.xlane.f32.xlu0 %v1648
    %v1650 = vpop.xlane.xlu0 %1649
    %v1651 = vsel %vm81, %v1629, 0.0
    %1652 = vadd.xlane.f32.xlu0 %v1651
    %v1653 = vpop.xlane.xlu0 %1652
    %v1654 = vmul.f32 %v1632, %v106
    %v1655 = vmul.f32 %v1635, %v106
    %v1656 = vmul.f32 %v1638, %v106
    %v1657 = vmul.f32 %v1641, %v106
    %v1658 = vmul.f32 %v1644, %v106
    %v1659 = vmul.f32 %v1647, %v106
    %v1660 = vmul.f32 %v1650, %v106
    %v1661 = vmul.f32 %v1653, %v106
    %v1662 = vsub.f32 %v1622, %v1654
    %v1663 = vsub.f32 %v1623, %v1655
    %v1664 = vsub.f32 %v1624, %v1656
    %v1665 = vsub.f32 %v1625, %v1657
    %v1666 = vsub.f32 %v1626, %v1658
    %v1667 = vsub.f32 %v1627, %v1659
    %v1668 = vsub.f32 %v1628, %v1660
    %v1669 = vsub.f32 %v1629, %v1661
    %v1670 = vmul.f32 %v1662, %v1662
    %v1671 = vmul.f32 %v1663, %v1663
    %v1672 = vmul.f32 %v1664, %v1664
    %v1673 = vmul.f32 %v1665, %v1665
    %v1674 = vmul.f32 %v1666, %v1666
    %v1675 = vmul.f32 %v1667, %v1667
    %v1676 = vmul.f32 %v1668, %v1668
    %v1677 = vmul.f32 %v1669, %v1669
    %v1678 = vsel %vm81, %v1670, 0.0
    %1679 = vadd.xlane.f32.xlu0 %v1678
    %v1680 = vpop.xlane.xlu0 %1679
    %v1681 = vsel %vm81, %v1671, 0.0
    %1682 = vadd.xlane.f32.xlu0 %v1681
    %v1683 = vpop.xlane.xlu0 %1682
    %v1684 = vsel %vm81, %v1672, 0.0
    %1685 = vadd.xlane.f32.xlu0 %v1684
    %v1686 = vpop.xlane.xlu0 %1685
    %v1687 = vsel %vm81, %v1673, 0.0
    %1688 = vadd.xlane.f32.xlu0 %v1687
    %v1689 = vpop.xlane.xlu0 %1688
    %v1690 = vsel %vm81, %v1674, 0.0
    %1691 = vadd.xlane.f32.xlu0 %v1690
    %v1692 = vpop.xlane.xlu0 %1691
    %v1693 = vsel %vm81, %v1675, 0.0
    %1694 = vadd.xlane.f32.xlu0 %v1693
    %v1695 = vpop.xlane.xlu0 %1694
    %v1696 = vsel %vm81, %v1676, 0.0
    %1697 = vadd.xlane.f32.xlu0 %v1696
    %v1698 = vpop.xlane.xlu0 %1697
    %v1699 = vsel %vm81, %v1677, 0.0
    %1700 = vadd.xlane.f32.xlu0 %v1699
    %v1701 = vpop.xlane.xlu0 %1700
    %v1702 = vmul.f32 %v1680, %v106
    %v1703 = vmul.f32 %v1683, %v106
    %v1704 = vmul.f32 %v1686, %v106
    %v1705 = vmul.f32 %v1689, %v106
    %v1706 = vmul.f32 %v1692, %v106
    %v1707 = vmul.f32 %v1695, %v106
    %v1708 = vmul.f32 %v1698, %v106
    %v1709 = vmul.f32 %v1701, %v106
    %v1710 = vadd.f32 %v1702, 1e-05
    %v1711 = vadd.f32 %v1703, 1e-05
    %v1712 = vadd.f32 %v1704, 1e-05
    %v1713 = vadd.f32 %v1705, 1e-05
    %v1714 = vadd.f32 %v1706, 1e-05
    %v1715 = vadd.f32 %v1707, 1e-05
    %v1716 = vadd.f32 %v1708, 1e-05
    %v1717 = vadd.f32 %v1709, 1e-05
    %v1718 = vrsqrt.pop %v1710
    %v1719 = vrsqrt.pop %v1711
    %v1720 = vrsqrt.pop %v1712
    %v1721 = vrsqrt.pop %v1713
    %v1722 = vrsqrt.pop %v1714
    %v1723 = vrsqrt.pop %v1715
    %v1724 = vrsqrt.pop %v1716
    %v1725 = vrsqrt.pop %v1717
    %v1726 = vmul.f32 %v1662, %v1718
    %v1727 = vmul.f32 %v1663, %v1719
    %v1728 = vmul.f32 %v1664, %v1720
    %v1729 = vmul.f32 %v1665, %v1721
    %v1730 = vmul.f32 %v1666, %v1722
    %v1731 = vmul.f32 %v1667, %v1723
    %v1732 = vmul.f32 %v1668, %v1724
    %v1733 = vmul.f32 %v1669, %v1725
    %v1734 = vlaneseq
    %v1735 = vshrl.u32 %v1734, 7
    %v1736 = vsub.s32 2, %v1735
    %v1737 = vrot.slane %v31, %v1736
    %v1738 = vmul.f32 %v1726, %v1737
    %v1739 = vmul.f32 %v1727, %v1737
    %v1740 = vmul.f32 %v1728, %v1737
    %v1741 = vmul.f32 %v1729, %v1737
    %v1742 = vmul.f32 %v1730, %v1737
    %v1743 = vmul.f32 %v1731, %v1737
    %v1744 = vmul.f32 %v1732, %v1737
    %v1745 = vmul.f32 %v1733, %v1737
    %v1746 = vlaneseq
    %v1747 = vshrl.u32 %v1746, 7
    %v1748 = vsub.s32 3, %v1747
    %v1749 = vrot.slane %v31, %v1748
    %v1750 = vadd.f32 %v1738, %v1749
    %v1751 = vadd.f32 %v1739, %v1749
    %v1752 = vadd.f32 %v1740, %v1749
    %v1753 = vadd.f32 %v1741, %v1749
    %v1754 = vadd.f32 %v1742, %v1749
    %v1755 = vadd.f32 %v1743, %v1749
    %v1756 = vadd.f32 %v1744, %v1749
    %v1757 = vadd.f32 %v1745, %v1749
    %vm1766 = vcmask 1046528
    %v1767 = vrot.slane %v1750, 1
    %v1768 = vrot.slane %v1751, 1
    %v1769 = vsel %vm1766, %v1767, %v1768
    %v1770 = vrot.slane %v1752, 1
    %v1771 = vsel %vm1766, %v1768, %v1770
    %v1772 = vrot.slane %v1753, 1
    %v1773 = vsel %vm1766, %v1770, %v1772
    %v1774 = vrot.slane %v1754, 1
    %v1775 = vrot.slane %v1755, 1
    %v1776 = vsel %vm1766, %v1774, %v1775
    %v1777 = vrot.slane %v1756, 1
    %v1778 = vsel %vm1766, %v1775, %v1777
    %v1779 = vrot.slane %v1757, 1
    %v1780 = vsel %vm1766, %v1777, %v1779
    %v1785 = vsel %vm1766, %v1772, %v1767
    %v1786 = vsel %vm1766, %v1779, %v1774
    %vm1787 = vcmask 1045504
    %v1788 = vrot.slane %v1750, 2
    %v1789 = vrot.slane %v1751, 2
    %v1790 = vsel %vm1787, %v1788, %v1789
    %v1791 = vrot.slane %v1752, 2
    %v1792 = vsel %vm1787, %v1789, %v1791
    %v1793 = vrot.slane %v1753, 2
    %v1794 = vsel %vm1787, %v1791, %v1793
    %v1795 = vrot.slane %v1754, 2
    %v1796 = vrot.slane %v1755, 2
    %v1797 = vsel %vm1787, %v1795, %v1796
    %v1798 = vrot.slane %v1756, 2
    %v1799 = vsel %vm1787, %v1796, %v1798
    %v1800 = vrot.slane %v1757, 2
    %v1801 = vsel %vm1787, %v1798, %v1800
    %v1806 = vsel %vm1787, %v1793, %v1788
    %v1807 = vsel %vm1787, %v1800, %v1795
    %vm1808 = vcmask 1044480
    %v1809 = vrot.slane %v1750, 3
    %v1810 = vrot.slane %v1751, 3
    %v1811 = vsel %vm1808, %v1809, %v1810
    %v1812 = vrot.slane %v1752, 3
    %v1813 = vsel %vm1808, %v1810, %v1812
    %v1814 = vrot.slane %v1753, 3
    %v1815 = vsel %vm1808, %v1812, %v1814
    %v1816 = vrot.slane %v1754, 3
    %v1817 = vrot.slane %v1755, 3
    %v1818 = vsel %vm1808, %v1816, %v1817
    %v1819 = vrot.slane %v1756, 3
    %v1820 = vsel %vm1808, %v1817, %v1819
    %v1821 = vrot.slane %v1757, 3
    %v1822 = vsel %vm1808, %v1819, %v1821
    %v1827 = vsel %vm1808, %v1814, %v1809
    %v1828 = vsel %vm1808, %v1821, %v1816
    %vm1829 = vcmask 1043456
    %v1830 = vrot.slane %v1750, 4
    %v1831 = vrot.slane %v1751, 4
    %v1832 = vsel %vm1829, %v1830, %v1831
    %v1833 = vrot.slane %v1752, 4
    %v1834 = vsel %vm1829, %v1831, %v1833
    %v1835 = vrot.slane %v1753, 4
    %v1836 = vsel %vm1829, %v1833, %v1835
    %v1837 = vrot.slane %v1754, 4
    %v1838 = vrot.slane %v1755, 4
    %v1839 = vsel %vm1829, %v1837, %v1838
    %v1840 = vrot.slane %v1756, 4
    %v1841 = vsel %vm1829, %v1838, %v1840
    %v1842 = vrot.slane %v1757, 4
    %v1843 = vsel %vm1829, %v1840, %v1842
    %v1848 = vsel %vm1829, %v1835, %v1830
    %v1849 = vsel %vm1829, %v1842, %v1837
    %vm1850 = vcmask 1042432
    %v1851 = vrot.slane %v1750, 5
    %v1852 = vrot.slane %v1751, 5
    %v1853 = vsel %vm1850, %v1851, %v1852
    %v1854 = vrot.slane %v1752, 5
    %v1855 = vsel %vm1850, %v1852, %v1854
    %v1856 = vrot.slane %v1753, 5
    %v1857 = vsel %vm1850, %v1854, %v1856
    %v1858 = vrot.slane %v1754, 5
    %v1859 = vrot.slane %v1755, 5
    %v1860 = vsel %vm1850, %v1858, %v1859
    %v1861 = vrot.slane %v1756, 5
    %v1862 = vsel %vm1850, %v1859, %v1861
    %v1863 = vrot.slane %v1757, 5
    %v1864 = vsel %vm1850, %v1861, %v1863
    %v1869 = vsel %vm1850, %v1856, %v1851
    %v1870 = vsel %vm1850, %v1863, %v1858
    %vm1871 = vcmask 1041408
    %v1872 = vrot.slane %v1750, 6
    %v1873 = vrot.slane %v1751, 6
    %v1874 = vsel %vm1871, %v1872, %v1873
    %v1875 = vrot.slane %v1752, 6
    %v1876 = vsel %vm1871, %v1873, %v1875
    %v1877 = vrot.slane %v1753, 6
    %v1878 = vsel %vm1871, %v1875, %v1877
    %v1879 = vrot.slane %v1754, 6
    %v1880 = vrot.slane %v1755, 6
    %v1881 = vsel %vm1871, %v1879, %v1880
    %v1882 = vrot.slane %v1756, 6
    %v1883 = vsel %vm1871, %v1880, %v1882
    %v1884 = vrot.slane %v1757, 6
    %v1885 = vsel %vm1871, %v1882, %v1884
    %v1890 = vsel %vm1871, %v1877, %v1872
    %v1891 = vsel %vm1871, %v1884, %v1879
    %1894 = vrot.lane.b32.xlu0 %v1769, 8
    %v1895 = vpop.permute.xlu0 %1894
    %1896 = vrot.lane.b32.xlu0 %v1771, 8
    %v1897 = vpop.permute.xlu0 %1896
    %1898 = vrot.lane.b32.xlu0 %v1773, 8
    %v1899 = vpop.permute.xlu0 %1898
    %1900 = vrot.lane.b32.xlu0 %v1785, 8
    %v1901 = vpop.permute.xlu0 %1900
    %1902 = vrot.lane.b32.xlu0 %v1776, 8
    %v1903 = vpop.permute.xlu0 %1902
    %1904 = vrot.lane.b32.xlu0 %v1778, 8
    %v1905 = vpop.permute.xlu0 %1904
    %1906 = vrot.lane.b32.xlu0 %v1780, 8
    %v1907 = vpop.permute.xlu0 %1906
    %1908 = vrot.lane.b32.xlu0 %v1786, 8
    %v1909 = vpop.permute.xlu0 %1908
    %1920 = vrot.lane.b32.xlu0 %v1790, 16
    %v1921 = vpop.permute.xlu0 %1920
    %1922 = vrot.lane.b32.xlu0 %v1792, 16
    %v1923 = vpop.permute.xlu0 %1922
    %1924 = vrot.lane.b32.xlu0 %v1794, 16
    %v1925 = vpop.permute.xlu0 %1924
    %1926 = vrot.lane.b32.xlu0 %v1806, 16
    %v1927 = vpop.permute.xlu0 %1926
    %1928 = vrot.lane.b32.xlu0 %v1797, 16
    %v1929 = vpop.permute.xlu0 %1928
    %1930 = vrot.lane.b32.xlu0 %v1799, 16
    %v1931 = vpop.permute.xlu0 %1930
    %1932 = vrot.lane.b32.xlu0 %v1801, 16
    %v1933 = vpop.permute.xlu0 %1932
    %1934 = vrot.lane.b32.xlu0 %v1807, 16
    %v1935 = vpop.permute.xlu0 %1934
    %1946 = vrot.lane.b32.xlu0 %v1811, 24
    %v1947 = vpop.permute.xlu0 %1946
    %1948 = vrot.lane.b32.xlu0 %v1813, 24
    %v1949 = vpop.permute.xlu0 %1948
    %1950 = vrot.lane.b32.xlu0 %v1815, 24
    %v1951 = vpop.permute.xlu0 %1950
    %1952 = vrot.lane.b32.xlu0 %v1827, 24
    %v1953 = vpop.permute.xlu0 %1952
    %1954 = vrot.lane.b32.xlu0 %v1818, 24
    %v1955 = vpop.permute.xlu0 %1954
    %1956 = vrot.lane.b32.xlu0 %v1820, 24
    %v1957 = vpop.permute.xlu0 %1956
    %1958 = vrot.lane.b32.xlu0 %v1822, 24
    %v1959 = vpop.permute.xlu0 %1958
    %1960 = vrot.lane.b32.xlu0 %v1828, 24
    %v1961 = vpop.permute.xlu0 %1960
    %1972 = vrot.lane.b32.xlu0 %v1832, 32
    %v1973 = vpop.permute.xlu0 %1972
    %1974 = vrot.lane.b32.xlu0 %v1834, 32
    %v1975 = vpop.permute.xlu0 %1974
    %1976 = vrot.lane.b32.xlu0 %v1836, 32
    %v1977 = vpop.permute.xlu0 %1976
    %1978 = vrot.lane.b32.xlu0 %v1848, 32
    %v1979 = vpop.permute.xlu0 %1978
    %1980 = vrot.lane.b32.xlu0 %v1839, 32
    %v1981 = vpop.permute.xlu0 %1980
    %1982 = vrot.lane.b32.xlu0 %v1841, 32
    %v1983 = vpop.permute.xlu0 %1982
    %1984 = vrot.lane.b32.xlu0 %v1843, 32
    %v1985 = vpop.permute.xlu0 %1984
    %1986 = vrot.lane.b32.xlu0 %v1849, 32
    %v1987 = vpop.permute.xlu0 %1986
    %1998 = vrot.lane.b32.xlu0 %v1853, 40
    %v1999 = vpop.permute.xlu0 %1998
    %2000 = vrot.lane.b32.xlu0 %v1855, 40
    %v2001 = vpop.permute.xlu0 %2000
    %2002 = vrot.lane.b32.xlu0 %v1857, 40
    %v2003 = vpop.permute.xlu0 %2002
    %2004 = vrot.lane.b32.xlu0 %v1869, 40
    %v2005 = vpop.permute.xlu0 %2004
    %2006 = vrot.lane.b32.xlu0 %v1860, 40
    %v2007 = vpop.permute.xlu0 %2006
    %2008 = vrot.lane.b32.xlu0 %v1862, 40
    %v2009 = vpop.permute.xlu0 %2008
    %2010 = vrot.lane.b32.xlu0 %v1864, 40
    %v2011 = vpop.permute.xlu0 %2010
    %2012 = vrot.lane.b32.xlu0 %v1870, 40
    %v2013 = vpop.permute.xlu0 %2012
    %2024 = vrot.lane.b32.xlu0 %v1874, 48
    %v2025 = vpop.permute.xlu0 %2024
    %2026 = vrot.lane.b32.xlu0 %v1876, 48
    %v2027 = vpop.permute.xlu0 %2026
    %2028 = vrot.lane.b32.xlu0 %v1878, 48
    %v2029 = vpop.permute.xlu0 %2028
    %2030 = vrot.lane.b32.xlu0 %v1890, 48
    %v2031 = vpop.permute.xlu0 %2030
    %2032 = vrot.lane.b32.xlu0 %v1881, 48
    %v2033 = vpop.permute.xlu0 %2032
    %2034 = vrot.lane.b32.xlu0 %v1883, 48
    %v2035 = vpop.permute.xlu0 %2034
    %2036 = vrot.lane.b32.xlu0 %v1885, 48
    %v2037 = vpop.permute.xlu0 %2036
    %2038 = vrot.lane.b32.xlu0 %v1891, 48
    %v2039 = vpop.permute.xlu0 %2038
    %v2048 = vsel %vm81, %v1750, %v1895
    %v2049 = vsel %vm81, %v1751, %v1897
    %v2050 = vsel %vm81, %v1752, %v1899
    %v2051 = vsel %vm81, %v1753, %v1901
    %v2052 = vsel %vm81, %v1754, %v1903
    %v2053 = vsel %vm81, %v1755, %v1905
    %v2054 = vsel %vm81, %v1756, %v1907
    %v2055 = vsel %vm81, %v1757, %v1909
    %vm2056 = vcmask 130048
    %v2057 = vsel %vm2056, %v2048, %v1921
    %v2058 = vsel %vm2056, %v2049, %v1923
    %v2059 = vsel %vm2056, %v2050, %v1925
    %v2060 = vsel %vm2056, %v2051, %v1927
    %v2061 = vsel %vm2056, %v2052, %v1929
    %v2062 = vsel %vm2056, %v2053, %v1931
    %v2063 = vsel %vm2056, %v2054, %v1933
    %v2064 = vsel %vm2056, %v2055, %v1935
    %vm2065 = vcmask 195584
    %v2066 = vsel %vm2065, %v2057, %v1947
    %v2067 = vsel %vm2065, %v2058, %v1949
    %v2068 = vsel %vm2065, %v2059, %v1951
    %v2069 = vsel %vm2065, %v2060, %v1953
    %v2070 = vsel %vm2065, %v2061, %v1955
    %v2071 = vsel %vm2065, %v2062, %v1957
    %v2072 = vsel %vm2065, %v2063, %v1959
    %v2073 = vsel %vm2065, %v2064, %v1961
    %v2074 = vsel %vm796, %v2066, %v1973
    %v2075 = vsel %vm796, %v2067, %v1975
    %v2076 = vsel %vm796, %v2068, %v1977
    %v2077 = vsel %vm796, %v2069, %v1979
    %v2078 = vsel %vm796, %v2070, %v1981
    %v2079 = vsel %vm796, %v2071, %v1983
    %v2080 = vsel %vm796, %v2072, %v1985
    %v2081 = vsel %vm796, %v2073, %v1987
    %vm2082 = vcmask 326656
    %v2083 = vsel %vm2082, %v2074, %v1999
    %v2084 = vsel %vm2082, %v2075, %v2001
    %v2085 = vsel %vm2082, %v2076, %v2003
    %v2086 = vsel %vm2082, %v2077, %v2005
    %v2087 = vsel %vm2082, %v2078, %v2007
    %v2088 = vsel %vm2082, %v2079, %v2009
    %v2089 = vsel %vm2082, %v2080, %v2011
    %v2090 = vsel %vm2082, %v2081, %v2013
    %vm2091 = vcmask 392192
    %v2092 = vsel %vm2091, %v2083, %v2025
    %v2093 = vsel %vm2091, %v2084, %v2027
    %v2094 = vsel %vm2091, %v2085, %v2029
    %v2095 = vsel %vm2091, %v2086, %v2031
    %v2096 = vsel %vm2091, %v2087, %v2033
    %v2097 = vsel %vm2091, %v2088, %v2035
    %v2098 = vsel %vm2091, %v2089, %v2037
    %v2099 = vsel %vm2091, %v2090, %v2039
    %v2100 = vld [vmem:[%s5] sm:$0x7]
    %v2101 = vld [vmem:[%s4] sm:$0xff]
    %v2102 = vld [vmem:[%s4 + $0x8] sm:$0xff]
    %v2103 = vld [vmem:[%s4 + $0x10] sm:$0xff]
    %v2104 = vld [vmem:[%s4 + $0x18] sm:$0xff]
    %v2105 = vld [vmem:[%s4 + $0x20] sm:$0xff]
    %v2106 = vld [vmem:[%s4 + $0x28] sm:$0xff]
    %v2107 = vld [vmem:[%s4 + $0x30] sm:$0xff]
    %v2108 = vlaneseq
    %v2109 = vshrl.u32 %v2108, 7
    %v2110 = vsub.s32 0, %v2109
    %v2111 = vrot.slane %v2100, %v2110
    %vm2112 = vcmask 457728
    %v2114 = vsel %vm2112, %v2092, 0
    %v2117 = vsel %vm2112, %v2093, 0
    %v2120 = vsel %vm2112, %v2094, 0
    %v2123 = vsel %vm2112, %v2095, 0
    %v2126 = vsel %vm2112, %v2096, 0
    %v2129 = vsel %vm2112, %v2097, 0
    %v2132 = vsel %vm2112, %v2098, 0
    %v2135 = vsel %vm2112, %v2099, 0
    %2137 = vmatprep.subr.mxu0 0.0
    %2138 = vmatpush1.msra.mxu0 %v2101
    %2139 = vmatprep.subr.mxu0 0.0
    %2140 = vmatpush1.msra.mxu0 %v2102
    %2141 = vmatprep.subr.mxu0 0.0
    %2142 = vmatpush1.msra.mxu0 %v2103
    %2143 = vmatprep.subr.mxu0 0.0
    %2144 = vmatpush1.msra.mxu0 %v2104
    %2145 = vmatprep.subr.mxu0 0.0
    %2146 = vmatpush1.msra.mxu0 %v2105
    %2147 = vmatprep.subr.mxu0 0.0
    %2148 = vmatpush1.msra.mxu0 %v2106
    %2149 = vmatprep.subr.mxu0 0.0
    %2150 = vmatpush1.msra.mxu0 %v2107
    %2151 = vmatprep.subr.mxu0 0.0
    %2152 = vmatpush1.msra.mxu0 0.0
    %2153 = vmatprep.subr.mxu0 0.0
    %2154 = vmatpush1.msra.mxu0 0.0
    %2155 = vmatprep.subr.mxu0 0.0
    %2156 = vmatpush1.msra.mxu0 0.0
    %2157 = vmatprep.subr.mxu0 0.0
    %2158 = vmatpush1.msra.mxu0 0.0
    %2159 = vmatprep.subr.mxu0 0.0
    %2160 = vmatpush1.msra.mxu0 0.0
    %2161 = vmatprep.subr.mxu0 0.0
    %2162 = vmatpush1.msra.mxu0 0.0
    %2163 = vmatprep.subr.mxu0 0.0
    %2164 = vmatpush1.msra.mxu0 0.0
    %2165 = vmatprep.subr.mxu0 0.0
    %2166 = vmatpush1.msra.mxu0 0.0
    %2167 = vmatprep.subr.mxu0 0.0
    %2168 = vmatpush1.msra.mxu0 0.0
    %2169 = vmatprep.subr.mxu0 0.0
    %2170 = vmatpush1.msra.mxu0 0.0
    %2171 = vmatprep.subr.mxu0 0.0
    %2172 = vmatpush1.msra.mxu0 0.0
    %2173 = vmatprep.subr.mxu0 0.0
    %2174 = vmatpush1.msra.mxu0 0.0
    %2175 = vmatprep.subr.mxu0 0.0
    %2176 = vmatpush1.msra.mxu0 0.0
    %2177 = vmatprep.subr.mxu0 0.0
    %2178 = vmatpush1.msra.mxu0 0.0
    %2179 = vmatprep.subr.mxu0 0.0
    %2180 = vmatpush1.msra.mxu0 0.0
    %2181 = vmatprep.subr.mxu0 0.0
    %2182 = vmatpush1.msra.mxu0 0.0
    %2183 = vmatprep.subr.mxu0 0.0
    %2184 = vmatpush1.msra.mxu0 0.0
    %2185 = vmatprep.subr.mxu0 0.0
    %2186 = vmatpush1.msra.mxu0 0.0
    %2187 = vmatprep.subr.mxu0 0.0
    %2188 = vmatpush1.msra.mxu0 0.0
    %2189 = vmatprep.subr.mxu0 0.0
    %2190 = vmatpush1.msra.mxu0 0.0
    %2191 = vmatprep.subr.mxu0 0.0
    %2192 = vmatpush1.msra.mxu0 0.0
    %2193 = vmatprep.subr.mxu0 0.0
    %2194 = vmatpush1.msra.mxu0 0.0
    %2195 = vmatprep.subr.mxu0 0.0
    %2196 = vmatpush1.msra.mxu0 0.0
    %2197 = vmatprep.subr.mxu0 0.0
    %2198 = vmatpush1.msra.mxu0 0.0
    %2199 = vmatprep.subr.mxu0 0.0
    %2200 = vmatpush1.msra.mxu0 0.0
    %2201 = vmatprep.mubr.f32.mxu0 0.0
    %2202 = vmatmul.mubr.f32.gmra.mrb[0].mxu0 %v2114
    %v2203 = vpop.f32.mrb[0].mxu0
    %v2204 = vadd.f32 %v2111, %v2203
    %v2205 = vpop.f32.mrb[0].mxu0
    %2206 = vmatprep.mubr.f32.mxu0 0.0
    %2207 = vmatmul.mubr.f32.gmra.mrb[0].mxu0 %v2117
    %v2208 = vpop.f32.mrb[0].mxu0
    %v2209 = vadd.f32 %v2111, %v2208
    %v2210 = vpop.f32.mrb[0].mxu0
    %2211 = vmatprep.mubr.f32.mxu0 0.0
    %2212 = vmatmul.mubr.f32.gmra.mrb[0].mxu0 %v2120
    %v2213 = vpop.f32.mrb[0].mxu0
    %v2214 = vadd.f32 %v2111, %v2213
    %v2215 = vpop.f32.mrb[0].mxu0
    %2216 = vmatprep.mubr.f32.mxu0 0.0
    %2217 = vmatmul.mubr.f32.gmra.mrb[0].mxu0 %v2123
    %v2218 = vpop.f32.mrb[0].mxu0
    %v2219 = vadd.f32 %v2111, %v2218
    %v2220 = vpop.f32.mrb[0].mxu0
    %2221 = vmatprep.mubr.f32.mxu0 0.0
    %2222 = vmatmul.mubr.f32.gmra.mrb[0].mxu0 %v2126
    %v2223 = vpop.f32.mrb[0].mxu0
    %v2224 = vadd.f32 %v2111, %v2223
    %v2225 = vpop.f32.mrb[0].mxu0
    %2226 = vmatprep.mubr.f32.mxu0 0.0
    %2227 = vmatmul.mubr.f32.gmra.mrb[0].mxu0 %v2129
    %v2228 = vpop.f32.mrb[0].mxu0
    %v2229 = vadd.f32 %v2111, %v2228
    %v2230 = vpop.f32.mrb[0].mxu0
    %2231 = vmatprep.mubr.f32.mxu0 0.0
    %2232 = vmatmul.mubr.f32.gmra.mrb[0].mxu0 %v2132
    %v2233 = vpop.f32.mrb[0].mxu0
    %v2234 = vadd.f32 %v2111, %v2233
    %v2235 = vpop.f32.mrb[0].mxu0
    %2236 = vmatprep.mubr.f32.mxu0 0.0
    %2237 = vmatmul.mubr.f32.gmra.mrb[0].mxu0 %v2135
    %v2238 = vpop.f32.mrb[0].mxu0
    %v2239 = vadd.f32 %v2111, %v2238
    %v2240 = vpop.f32.mrb[0].mxu0
    %2241 = vdwg.mxu0
    %v2242 = vmax.f32 %v2204, 0.0
    %v2243 = vmax.f32 %v2209, 0.0
    %v2244 = vmax.f32 %v2214, 0.0
    %v2245 = vmax.f32 %v2219, 0.0
    %v2246 = vmax.f32 %v2224, 0.0
    %v2247 = vmax.f32 %v2229, 0.0
    %v2248 = vmax.f32 %v2234, 0.0
    %v2249 = vmax.f32 %v2239, 0.0
    %v2250 = vlaneseq
    %v2251 = vshrl.u32 %v2250, 7
    %v2252 = vadd.s32 %v2251, 8
    %v2253 = vadd.s32 %v2251, 16
    %v2254 = vadd.s32 %v2251, 24
    %vm2255 = vcmp.lt.s32.totalorder %v2251, 26
    %vm2256 = vcmp.lt.s32.totalorder %v2252, 26
    %vm2257 = vcmp.lt.s32.totalorder %v2253, 26
    %vm2258 = vcmp.lt.s32.totalorder %v2254, 26
    %v2259 = vsel %vm2255, 1, 0
    %v2260 = vsel %vm2256, 1, 0
    %v2261 = vsel %vm2257, 1, 0
    %v2262 = vsel %vm2258, 1, 0
    %v2263 = vcvt.s32.f32 %v2259
    %v2264 = vcvt.s32.f32 %v2260
    %v2265 = vcvt.s32.f32 %v2261
    %v2266 = vcvt.s32.f32 %v2262
    %v2267 = vmul.f32 %v2242, %v2263
    %v2268 = vmul.f32 %v2243, %v2264
    %v2269 = vmul.f32 %v2244, %v2265
    %v2270 = vmul.f32 %v2245, %v2266
    %v2271 = vmul.f32 %v2246, %v2263
    %v2272 = vmul.f32 %v2247, %v2264
    %v2273 = vmul.f32 %v2248, %v2265
    %v2274 = vmul.f32 %v2249, %v2266
    %vm2275 = vcmask 523264
    %v2276 = vsel %vm2275, %v2267, 0.0
    %v2277 = vsel %vm2275, %v2268, 0.0
    %v2278 = vadd.f32 %v2276, %v2277
    %v2279 = vsel %vm2275, %v2269, 0.0
    %v2280 = vadd.f32 %v2278, %v2279
    %v2281 = vsel %vm2275, %v2270, 0.0
    %v2282 = vadd.f32 %v2280, %v2281
    %v2283 = vrot.slane %v2282, 4
    %v2284 = vadd.f32 %v2282, %v2283
    %v2285 = vrot.slane %v2284, 2
    %v2286 = vadd.f32 %v2284, %v2285
    %v2287 = vrot.slane %v2286, 1
    %v2288 = vadd.f32 %v2286, %v2287
    %v2289 = vsel %vm2275, %v2271, 0.0
    %v2290 = vsel %vm2275, %v2272, 0.0
    %v2291 = vadd.f32 %v2289, %v2290
    %v2292 = vsel %vm2275, %v2273, 0.0
    %v2293 = vadd.f32 %v2291, %v2292
    %v2294 = vsel %vm2275, %v2274, 0.0
    %v2295 = vadd.f32 %v2293, %v2294
    %v2296 = vrot.slane %v2295, 4
    %v2297 = vadd.f32 %v2295, %v2296
    %v2298 = vrot.slane %v2297, 2
    %v2299 = vadd.f32 %v2297, %v2298
    %v2300 = vrot.slane %v2299, 1
    %v2301 = vadd.f32 %v2299, %v2300
    %v2302 = vmul.f32 %v2288, 0.03846154
    %v2303 = vmul.f32 %v2301, 0.03846154
    %v2304 = vld [vmem:[%s6] sm:$0xff]
    %v2305 = vld [vmem:[%s6 + $0x8] sm:$0xff]
    %v2306 = vld [vmem:[%s6 + $0x10] sm:$0xff]
    %v2307 = vld [vmem:[%s6 + $0x18] sm:$0xff]
    %v2308 = vld [vmem:[%s6 + $0x20] sm:$0xff]
    %v2309 = vld [vmem:[%s6 + $0x28] sm:$0xff]
    %v2310 = vld [vmem:[%s6 + $0x30] sm:$0xff]
    %v2311 = vld [vmem:[%s6 + $0x38] sm:$0xff]
    %v2312 = vlaneseq
    %v2313 = vshrl.u32 %v2312, 7
    %v2314 = vsub.s32 1, %v2313
    %v2315 = vrot.slane %v2100, %v2314
    %vm2318 = vcmask 1041409
    %v2319 = vsel %vm2318, %v2303, %v2302
    %v2320 = vsel %vm2275, %v2319, 0
    %2322 = vmatprep.subr.mxu0 0.0
    %2323 = vmatpush1.msra.mxu0 %v2304
    %2324 = vmatprep.subr.mxu0 0.0
    %2325 = vmatpush1.msra.mxu0 %v2305
    %2326 = vmatprep.subr.mxu0 0.0
    %2327 = vmatpush1.msra.mxu0 %v2306
    %2328 = vmatprep.subr.mxu0 0.0
    %2329 = vmatpush1.msra.mxu0 %v2307
    %2330 = vmatprep.subr.mxu0 0.0
    %2331 = vmatpush1.msra.mxu0 %v2308
    %2332 = vmatprep.subr.mxu0 0.0
    %2333 = vmatpush1.msra.mxu0 %v2309
    %2334 = vmatprep.subr.mxu0 0.0
    %2335 = vmatpush1.msra.mxu0 %v2310
    %2336 = vmatprep.subr.mxu0 0.0
    %2337 = vmatpush1.msra.mxu0 %v2311
    %2338 = vmatprep.subr.mxu0 0.0
    %2339 = vmatpush1.msra.mxu0 0.0
    %2340 = vmatprep.subr.mxu0 0.0
    %2341 = vmatpush1.msra.mxu0 0.0
    %2342 = vmatprep.subr.mxu0 0.0
    %2343 = vmatpush1.msra.mxu0 0.0
    %2344 = vmatprep.subr.mxu0 0.0
    %2345 = vmatpush1.msra.mxu0 0.0
    %2346 = vmatprep.subr.mxu0 0.0
    %2347 = vmatpush1.msra.mxu0 0.0
    %2348 = vmatprep.subr.mxu0 0.0
    %2349 = vmatpush1.msra.mxu0 0.0
    %2350 = vmatprep.subr.mxu0 0.0
    %2351 = vmatpush1.msra.mxu0 0.0
    %2352 = vmatprep.subr.mxu0 0.0
    %2353 = vmatpush1.msra.mxu0 0.0
    %2354 = vmatprep.subr.mxu0 0.0
    %2355 = vmatpush1.msra.mxu0 0.0
    %2356 = vmatprep.subr.mxu0 0.0
    %2357 = vmatpush1.msra.mxu0 0.0
    %2358 = vmatprep.subr.mxu0 0.0
    %2359 = vmatpush1.msra.mxu0 0.0
    %2360 = vmatprep.subr.mxu0 0.0
    %2361 = vmatpush1.msra.mxu0 0.0
    %2362 = vmatprep.subr.mxu0 0.0
    %2363 = vmatpush1.msra.mxu0 0.0
    %2364 = vmatprep.subr.mxu0 0.0
    %2365 = vmatpush1.msra.mxu0 0.0
    %2366 = vmatprep.subr.mxu0 0.0
    %2367 = vmatpush1.msra.mxu0 0.0
    %2368 = vmatprep.subr.mxu0 0.0
    %2369 = vmatpush1.msra.mxu0 0.0
    %2370 = vmatprep.subr.mxu0 0.0
    %2371 = vmatpush1.msra.mxu0 0.0
    %2372 = vmatprep.subr.mxu0 0.0
    %2373 = vmatpush1.msra.mxu0 0.0
    %2374 = vmatprep.subr.mxu0 0.0
    %2375 = vmatpush1.msra.mxu0 0.0
    %2376 = vmatprep.subr.mxu0 0.0
    %2377 = vmatpush1.msra.mxu0 0.0
    %2378 = vmatprep.subr.mxu0 0.0
    %2379 = vmatpush1.msra.mxu0 0.0
    %2380 = vmatprep.subr.mxu0 0.0
    %2381 = vmatpush1.msra.mxu0 0.0
    %2382 = vmatprep.subr.mxu0 0.0
    %2383 = vmatpush1.msra.mxu0 0.0
    %2384 = vmatprep.subr.mxu0 0.0
    %2385 = vmatpush1.msra.mxu0 0.0
    %2386 = vmatprep.mubr.f32.mxu0 0.0
    %2387 = vmatmul.mubr.f32.gmra.mrb[0].mxu0 %v2320
    %v2388 = vpop.f32.mrb[0].mxu0
    %v2389 = vadd.f32 %v2315, %v2388
    %v2390 = vpop.f32.mrb[0].mxu0
    %2391 = vdwg.mxu0
    %v2392 = vxor.u32 %v2389, 2147483648
    %v2393 = vmul.f32 %v2392, 1.442695
    %v2394 = vpow.pop %v2393
    %v2395 = vadd.f32 %v2394, 1.0
    %v2396 = vrcp.pop %v2395
    %v2397 = vmul.f32 1.0, %v2396
    %v2398 = vld [vmem:[%s7] sm:$0xff]
    %v2399 = vld [vmem:[%s7 + $0x8] sm:$0xff]
    %v2400 = vlaneseq
    %v2401 = vshrl.u32 %v2400, 7
    %v2402 = vsub.s32 2, %v2401
    %v2403 = vrot.slane %v2100, %v2402
    %v2405 = vsel %vm2056, %v2397, 0
    %2407 = vmatprep.subr.mxu0 0.0
    %2408 = vmatpush1.msra.mxu0 %v2398
    %2409 = vmatprep.subr.mxu0 0.0
    %2410 = vmatpush1.msra.mxu0 %v2399
    %2411 = vmatprep.subr.mxu0 0.0
    %2412 = vmatpush1.msra.mxu0 0.0
    %2413 = vmatprep.subr.mxu0 0.0
    %2414 = vmatpush1.msra.mxu0 0.0
    %2415 = vmatprep.subr.mxu0 0.0
    %2416 = vmatpush1.msra.mxu0 0.0
    %2417 = vmatprep.subr.mxu0 0.0
    %2418 = vmatpush1.msra.mxu0 0.0
    %2419 = vmatprep.subr.mxu0 0.0
    %2420 = vmatpush1.msra.mxu0 0.0
    %2421 = vmatprep.subr.mxu0 0.0
    %2422 = vmatpush1.msra.mxu0 0.0
    %2423 = vmatprep.subr.mxu0 0.0
    %2424 = vmatpush1.msra.mxu0 0.0
    %2425 = vmatprep.subr.mxu0 0.0
    %2426 = vmatpush1.msra.mxu0 0.0
    %2427 = vmatprep.subr.mxu0 0.0
    %2428 = vmatpush1.msra.mxu0 0.0
    %2429 = vmatprep.subr.mxu0 0.0
    %2430 = vmatpush1.msra.mxu0 0.0
    %2431 = vmatprep.subr.mxu0 0.0
    %2432 = vmatpush1.msra.mxu0 0.0
    %2433 = vmatprep.subr.mxu0 0.0
    %2434 = vmatpush1.msra.mxu0 0.0
    %2435 = vmatprep.subr.mxu0 0.0
    %2436 = vmatpush1.msra.mxu0 0.0
    %2437 = vmatprep.subr.mxu0 0.0
    %2438 = vmatpush1.msra.mxu0 0.0
    %2439 = vmatprep.subr.mxu0 0.0
    %2440 = vmatpush1.msra.mxu0 0.0
    %2441 = vmatprep.subr.mxu0 0.0
    %2442 = vmatpush1.msra.mxu0 0.0
    %2443 = vmatprep.subr.mxu0 0.0
    %2444 = vmatpush1.msra.mxu0 0.0
    %2445 = vmatprep.subr.mxu0 0.0
    %2446 = vmatpush1.msra.mxu0 0.0
    %2447 = vmatprep.subr.mxu0 0.0
    %2448 = vmatpush1.msra.mxu0 0.0
    %2449 = vmatprep.subr.mxu0 0.0
    %2450 = vmatpush1.msra.mxu0 0.0
    %2451 = vmatprep.subr.mxu0 0.0
    %2452 = vmatpush1.msra.mxu0 0.0
    %2453 = vmatprep.subr.mxu0 0.0
    %2454 = vmatpush1.msra.mxu0 0.0
    %2455 = vmatprep.subr.mxu0 0.0
    %2456 = vmatpush1.msra.mxu0 0.0
    %2457 = vmatprep.subr.mxu0 0.0
    %2458 = vmatpush1.msra.mxu0 0.0
    %2459 = vmatprep.subr.mxu0 0.0
    %2460 = vmatpush1.msra.mxu0 0.0
    %2461 = vmatprep.subr.mxu0 0.0
    %2462 = vmatpush1.msra.mxu0 0.0
    %2463 = vmatprep.subr.mxu0 0.0
    %2464 = vmatpush1.msra.mxu0 0.0
    %2465 = vmatprep.subr.mxu0 0.0
    %2466 = vmatpush1.msra.mxu0 0.0
    %2467 = vmatprep.subr.mxu0 0.0
    %2468 = vmatpush1.msra.mxu0 0.0
    %2469 = vmatprep.subr.mxu0 0.0
    %2470 = vmatpush1.msra.mxu0 0.0
    %2471 = vmatprep.mubr.f32.mxu0 0.0
    %2472 = vmatmul.mubr.f32.gmra.mrb[0].mxu0 %v2405
    %v2473 = vpop.f32.mrb[0].mxu0
    %v2474 = vadd.f32 %v2403, %v2473
    %v2475 = vpop.f32.mrb[0].mxu0
    %2476 = vdwg.mxu0
    %v2477 = vmax.f32 %v2474, 0.0
    %vm2478 = vcmask 25600
    %2479 = vst.msk [vmem:[#allocation2] sm:$0x3] %vm2478, %v2477
    // Predicated region
    $region34: #{tabnet_forward.1} parent=1 // pred_check
      _
    $region35: #{tabnet_forward.1} parent=1 // pred_check_branch
      %2481 = sbr.rel (0) target = $region37
    $region36: #{tabnet_forward.1} parent=1 // pred_region
      %s2483 = ssub.s32 32, 32
      %2484 = vsyncadd [#allocation3], %s2483
      %s2486 = sshll.u32 [#allocation2], 4
      %s2487 = int_to_ptr.vmem [resolvable:$true] %s2486
      %2489 = dma.vmem_to_hbm [thread:$0]  %s2487, 32, %s8, [#allocation3]
    $region37: #{tabnet_forward.1} parent=1 // pred_fallthru
      _
    // Predicated region
    $region38: #{tabnet_forward.1} parent=1 // pred_check
      _
    $region39: #{tabnet_forward.1} parent=1 // pred_check_branch
      %2491 = sbr.rel (0) target = $region41
    $region40: #{tabnet_forward.1} parent=1 // pred_region
      %2492 = dma.done [#allocation3], 32
    $region41: #{tabnet_forward.1} parent=1 // pred_fallthru
      _
    %2493 = vsyncpa [#allocation3], 1

</llo_original>
